<compile_context>
chip_gen: v6e
topology: v6e:2x2x1
jax: 0.10.0
libtpu: 0.0.40
codegen_flags: <defaults>
</compile_context>

<pallas_src>
import functools

import jax
import jax.numpy as jnp
import numpy as np
from jax.experimental import pallas as pl
from jax.experimental.pallas import tpu as pltpu

EPS = 1e-5
KSZ = 3


# ------------------------------ the kernel -------------------------------

def _gateblock_kernel(H, W, ifsz, x_ref, slab_ref, out_ref):
    HW = H * W
    cfsz = ifsz // 2
    gsz = 2 * cfsz

    # static column offsets inside the packed parameter slab
    o_pw1 = 0                       # (cfsz rows, ifsz cols)
    o_pw2 = o_pw1 + ifsz            # (gsz  rows, cfsz cols)
    o_pw3 = o_pw2 + cfsz            # (ifsz rows, cfsz cols)
    o_dw1 = o_pw3 + cfsz            # (cfsz rows, 9 cols)
    o_dw2 = o_dw1 + 9               # (gsz  rows, 9 cols)
    o_dw3 = o_dw2 + 9               # (ifsz rows, 9 cols)
    o_gb = o_dw3 + 9                # 12 cols: gamma_k at 2k, beta_k at 2k+1

    slab = slab_ref[...].astype(jnp.float32)     # (Cmax, 47) -- one small tile

    def gamma(k, c):
        return slab[0:c, o_gb + 2 * k: o_gb + 2 * k + 1]          # (c, 1)

    def beta(k, c):
        return slab[0:c, o_gb + 2 * k + 1: o_gb + 2 * k + 2]      # (c, 1)

    # Boundary masks for the depthwise conv, built ONCE and reused by all three
    # convs and all samples in this block (taps are circular lane rolls).
    pos = jax.lax.broadcasted_iota(jnp.int32, (1, HW), 1)
    colp = pos % W
    row_ok = {-1: pos >= W, 0: None, 1: pos < (H - 1) * W}
    col_ok = {-1: colp >= 1, 0: None, 1: colp <= W - 2}
    masks = {}
    for dy in (-1, 0, 1):
        for dx in (-1, 0, 1):
            ms = [m for m in (row_ok[dy], col_ok[dx]) if m is not None]
            if not ms:
                masks[(dy, dx)] = None
            elif len(ms) == 1:
                masks[(dy, dx)] = ms[0]
            else:
                masks[(dy, dx)] = jnp.logical_and(ms[0], ms[1])

    def pconv(x, col_off, cout, cin):
        # 1x1 conv == per-output-channel weighted sum over <=4 input channels:
        # unrolled VPU broadcast-FMA, no MXU.
        w = slab[0:cout, col_off:col_off + cin]                    # (cout, cin)
        out = w[:, 0:1] * x[0:1, :]
        for i in range(1, cin):
            out = out + w[:, i:i + 1] * x[i:i + 1, :]
        return out                                                 # (cout, HW)

    def dwconv(x, coef):
        # depthwise 3x3 cross-correlation, zero padding 1.
        # x: (c, HW), coef: (c, 9) with taps row-major over (ky, kx).
        out = None
        t = 0
        for dy in (-1, 0, 1):
            for dx in (-1, 0, 1):
                off = dy * W + dx
                sh = x if off == 0 else pltpu.roll(x, (-off) % HW, axis=1)
                m = masks[(dy, dx)]
                if m is not None:
                    sh = jnp.where(m, sh, 0.0)
                term = sh * coef[:, t:t + 1]
                out = term if out is None else out + term
                t += 1
        return out

    def inorm(x, k, c):
        # fused single-pass InstanceNorm2d(affine=True), biased variance.
        m = jnp.mean(x, axis=1, keepdims=True)                     # (c, 1)
        ex2 = jnp.mean(x * x, axis=1, keepdims=True)               # (c, 1)
        var = ex2 - m * m
        scale = gamma(k, c) * jax.lax.rsqrt(var + EPS)             # (c, 1)
        return x * scale + (beta(k, c) - m * scale)

    def elu(x):
        return jnp.where(x > 0, x, jnp.exp(x) - 1.0)

    def sigmoid(x):
        # numerically stable exp(-|x|) form (no inf intermediate).
        e = jnp.exp(-jnp.abs(x))
        return jnp.where(x >= 0, 1.0, e) / (1.0 + e)

    nb = x_ref.shape[0]
    for s in range(nb):                                            # static unroll
        x = x_ref[s].astype(jnp.float32)                           # (ifsz, HW)

        t = pconv(x, o_pw1, cfsz, ifsz)                            # pCnv + IN
        t = inorm(t, 0, cfsz)
        t = dwconv(t, slab[0:cfsz, o_dw1:o_dw1 + 9])               # dsCnv + IN
        t = inorm(t, 1, cfsz)
        t = elu(t)                                                 # ELU

        t = pconv(t, o_pw2, gsz, cfsz)                             # pCnv + IN
        t = inorm(t, 2, gsz)
        t = dwconv(t, slab[0:gsz, o_dw2:o_dw2 + 9])                # dsCnv + IN
        t = inorm(t, 3, gsz)
        # Gate: chunk along channels; sigmoid(t1)*tanh(t0). torch t1.sub(2) is a no-op.
        t = sigmoid(t[cfsz:gsz, :]) * jnp.tanh(t[0:cfsz, :])

        t = pconv(t, o_pw3, ifsz, cfsz)                            # pCnv + IN
        t = inorm(t, 4, ifsz)
        t = dwconv(t, slab[0:ifsz, o_dw3:o_dw3 + 9])               # dsCnv + IN
        t = inorm(t, 5, ifsz)
        t = elu(t)                                                 # ELU

        out_ref[s] = (x + t).astype(out_ref.dtype)                 # residual


# ------------------------------ the wrapper -------------------------------

def gate_block_forward(x_nchw, params, ksz=KSZ):
    N, C, H, W = x_nchw.shape
    ifsz = C
    cfsz = C // 2
    gsz = 2 * cfsz
    HW = H * W
    cmax = max(ifsz, gsz)

    # NCHW -> (N, C, H*W) is just a reshape (no transpose); the kernel output is
    # lane-dense (last dim = H*W, a multiple of 128).
    x = x_nchw.reshape(N, C, HW)

    # ---- pack all 18 tiny parameters into one (cmax, 47) slab ----
    def pad_rows(a, rows):
        return jnp.pad(a, ((0, rows - a.shape[0]), (0, 0)))

    blocks = [
        pad_rows(params["wp1"], cmax),                          # (cfsz, ifsz)
        pad_rows(params["wp2"], cmax),                          # (gsz,  cfsz)
        pad_rows(params["wp3"], cmax),                          # (ifsz, cfsz)
        pad_rows(params["wd1"].reshape(cfsz, ksz * ksz), cmax),
        pad_rows(params["wd2"].reshape(gsz, ksz * ksz), cmax),
        pad_rows(params["wd3"].reshape(ifsz, ksz * ksz), cmax),
    ]
    gb_list = [("g1", "b1", cfsz), ("g2", "b2", cfsz), ("g3", "b3", gsz),
               ("g4", "b4", gsz), ("g5", "b5", ifsz), ("g6", "b6", ifsz)]
    for gname, bname, c in gb_list:
        blocks.append(jnp.pad(params[gname], (0, cmax - c))[:, None])
        blocks.append(jnp.pad(params[bname], (0, cmax - c))[:, None])
    slab = jnp.concatenate(blocks, axis=1).astype(jnp.float32)  # (cmax, 47)

    # ---- batch blocking: >=2 grid steps when possible (v7x megacore), several
    # samples per step to amortize per-step overhead. VMEM is tiny at this size.
    if N >= 2 and N % 2 == 0:
        nb, grid_n = N // 2, 2
    else:
        nb, grid_n = 1, N

    out = pl.pallas_call(
        functools.partial(_gateblock_kernel, H, W, ifsz),
        out_shape=jax.ShapeDtypeStruct((N, C, HW), x.dtype),
        grid=(grid_n,),
        in_specs=[pl.BlockSpec((nb, C, HW), lambda n: (n, 0, 0)),
                  pl.BlockSpec(slab.shape, lambda n: (0, 0))],
        out_specs=pl.BlockSpec((nb, C, HW), lambda n: (n, 0, 0)),
        compiler_params=pltpu.CompilerParams(
            dimension_semantics=("parallel",)),
    )(x, slab)
    return out.reshape(N, C, H, W)


# ------------------------ params + pure-JAX reference ------------------------

def init_params(key, ifsz, ksz=KSZ):
    cfsz = ifsz // 2
    ks = jax.random.split(key, 12)

    def w_pconv(k, co, ci):
        return 0.3 * jax.random.normal(k, (co, ci), jnp.float32)

    def w_dconv(k, c):
        return 0.3 * jax.random.normal(k, (c, ksz, ksz), jnp.float32)

    def affine(k, c):
        k1, k2 = jax.random.split(k)
        return (1.0 + 0.1 * jax.random.normal(k1, (c,), jnp.float32),
                0.1 * jax.random.normal(k2, (c,), jnp.float32))

    p = {}
    p["wp1"] = w_pconv(ks[0], cfsz, ifsz);       p["g1"], p["b1"] = affine(ks[1], cfsz)
    p["wd1"] = w_dconv(ks[2], cfsz);             p["g2"], p["b2"] = affine(ks[3], cfsz)
    p["wp2"] = w_pconv(ks[4], 2 * cfsz, cfsz);   p["g3"], p["b3"] = affine(ks[5], 2 * cfsz)
    p["wd2"] = w_dconv(ks[6], 2 * cfsz);         p["g4"], p["b4"] = affine(ks[7], 2 * cfsz)
    p["wp3"] = w_pconv(ks[8], ifsz, cfsz);       p["g5"], p["b5"] = affine(ks[9], ifsz)
    p["wd3"] = w_dconv(ks[10], ifsz);            p["g6"], p["b6"] = affine(ks[11], ifsz)
    return p


def ref_forward(x, p):
    def inorm(t, g, b):
        m = t.mean(axis=(2, 3), keepdims=True)
        v = ((t - m) ** 2).mean(axis=(2, 3), keepdims=True)
        return (t - m) / jnp.sqrt(v + EPS) * g[None, :, None, None] + b[None, :, None, None]

    def pconv(t, w):
        return jnp.einsum("nchw,oc->nohw", t, w)

    def dconv(t, w):
        return jax.lax.conv_general_dilated(
            t, w[:, None, :, :], (1, 1), ((1, 1), (1, 1)),
            feature_group_count=t.shape[1],
            dimension_numbers=("NCHW", "OIHW", "NCHW"))

    def elu(t):
        return jnp.where(t > 0, t, jnp.exp(t) - 1.0)

    t = inorm(pconv(x, p["wp1"]), p["g1"], p["b1"])
    t = inorm(dconv(t, p["wd1"]), p["g2"], p["b2"])
    t = elu(t)
    t = inorm(pconv(t, p["wp2"]), p["g3"], p["b3"])
    t = inorm(dconv(t, p["wd2"]), p["g4"], p["b4"])
    cf = t.shape[1] // 2
    t = jax.nn.sigmoid(t[:, cf:]) * jnp.tanh(t[:, :cf])
    t = inorm(pconv(t, p["wp3"]), p["g5"], p["b5"])
    t = inorm(dconv(t, p["wd3"]), p["g6"], p["b6"])
    t = elu(t)
    return x + t


if __name__ == "__main__":
    key = jax.random.PRNGKey(0)
    kx, kp = jax.random.split(key)
    N, C, H, W = 2, 4, 16, 16            # ifsz = 4 -> cfsz = 2
    x = jax.random.normal(kx, (N, C, H, W), dtype=jnp.float32)
    params = init_params(kp, C)

    out = jax.jit(gate_block_forward)(x, params)
    out = jax.block_until_ready(out)

    ref = ref_forward(x, params)
    assert out.shape == x.shape and out.dtype == x.dtype
    np.testing.assert_allclose(np.asarray(out), np.asarray(ref), rtol=1e-3, atol=1e-3)
    print("KERNEL_OK")
</pallas_src>

<mosaic_0001>
module attributes {stable_mosaic.version = 11 : i64} {
  func.func @_gateblock_kernel(%arg0: i32, %arg1: memref<1x4x256xf32, #tpu.memory_space<vmem>>, %arg2: memref<4x47xf32, #tpu.memory_space<vmem>>, %arg3: memref<1x4x256xf32, #tpu.memory_space<vmem>>) attributes {dimension_semantics = [#tpu.dimension_semantics<parallel>], iteration_bounds = array<i64: 2>, scalar_prefetch = 0 : i64, scratch_operands = 0 : i64, tpu.core_type = #tpu.core_type<tc>, window_params = [{transform_indices = @transform_0, window_bounds = array<i64: 1, 4, 256>}, {pipeline_mode = #tpu.pipeline_mode<synchronous>, transform_indices = @transform_1, window_bounds = array<i64: 4, 47>}, {transform_indices = @transform_2, window_bounds = array<i64: 1, 4, 256>}]} {
    %c0 = arith.constant 0 : index
    %c0_0 = arith.constant 0 : index
    %0 = vector.load %arg2[%c0, %c0_0] : memref<4x47xf32, #tpu.memory_space<vmem>>, vector<4x47xf32>
    %1 = tpu.iota {dimensions = array<i32: 1>} : vector<1x256xi32>
    %c16_i32 = arith.constant 16 : i32
    %c0_i32 = arith.constant 0 : i32
    %2 = arith.cmpi eq, %c16_i32, %c0_i32 : i32
    %c1_i32 = arith.constant 1 : i32
    %3 = arith.select %2, %c1_i32, %c16_i32 : i32
    %4 = vector.broadcast %3 : i32 to vector<1x256xi32>
    %5 = arith.remsi %1, %4 : vector<1x256xi32>
    %c0_i32_1 = arith.constant 0 : i32
    %6 = vector.broadcast %c0_i32_1 : i32 to vector<1x256xi32>
    %7 = arith.cmpi ne, %5, %6 : vector<1x256xi32>
    %c0_i32_2 = arith.constant 0 : i32
    %8 = vector.broadcast %c0_i32_2 : i32 to vector<1x256xi32>
    %9 = arith.cmpi slt, %5, %8 : vector<1x256xi32>
    %c0_i32_3 = arith.constant 0 : i32
    %10 = arith.cmpi slt, %3, %c0_i32_3 : i32
    %11 = vector.broadcast %10 : i1 to vector<1x256xi1>
    %12 = vector.broadcast %11 : vector<1x256xi1> to vector<1x256xi1>
    %13 = arith.xori %9, %12 : vector<1x256xi1>
    %14 = arith.andi %13, %7 : vector<1x256xi1>
    %15 = vector.broadcast %3 : i32 to vector<1x256xi32>
    %16 = arith.addi %5, %15 : vector<1x256xi32>
    %17 = arith.select %14, %16, %5 : vector<1x256xi1>, vector<1x256xi32>
    %c16_i32_4 = arith.constant 16 : i32
    %18 = vector.broadcast %c16_i32_4 : i32 to vector<1x256xi32>
    %19 = arith.cmpi sge, %1, %18 : vector<1x256xi32>
    %c240_i32 = arith.constant 240 : i32
    %20 = vector.broadcast %c240_i32 : i32 to vector<1x256xi32>
    %21 = arith.cmpi slt, %1, %20 : vector<1x256xi32>
    %c1_i32_5 = arith.constant 1 : i32
    %22 = vector.broadcast %c1_i32_5 : i32 to vector<1x256xi32>
    %23 = arith.cmpi sge, %17, %22 : vector<1x256xi32>
    %c14_i32 = arith.constant 14 : i32
    %24 = vector.broadcast %c14_i32 : i32 to vector<1x256xi32>
    %25 = arith.cmpi sle, %17, %24 : vector<1x256xi32>
    %26 = arith.andi %19, %23 : vector<1x256xi1>
    %27 = arith.andi %19, %25 : vector<1x256xi1>
    %28 = arith.andi %21, %23 : vector<1x256xi1>
    %29 = arith.andi %21, %25 : vector<1x256xi1>
    %c0_6 = arith.constant 0 : index
    %c0_7 = arith.constant 0 : index
    %c0_8 = arith.constant 0 : index
    %30 = vector.load %arg1[%c0_6, %c0_7, %c0_8] : memref<1x4x256xf32, #tpu.memory_space<vmem>>, vector<1x4x256xf32>
    %31 = vector.shape_cast %30 : vector<1x4x256xf32> to vector<4x256xf32>
    %32 = vector.extract_strided_slice %0 {offsets = [0, 0], sizes = [2, 4], strides = [1, 1]} : vector<4x47xf32> to vector<2x4xf32>
    %33 = vector.extract_strided_slice %32 {offsets = [0, 0], sizes = [2, 1], strides = [1, 1]} : vector<2x4xf32> to vector<2x1xf32>
    %34 = vector.extract_strided_slice %31 {offsets = [0, 0], sizes = [1, 256], strides = [1, 1]} : vector<4x256xf32> to vector<1x256xf32>
    %35 = vector.broadcast %33 : vector<2x1xf32> to vector<2x256xf32>
    %36 = vector.broadcast %34 : vector<1x256xf32> to vector<2x256xf32>
    %37 = arith.mulf %35, %36 : vector<2x256xf32>
    %38 = vector.extract_strided_slice %32 {offsets = [0, 1], sizes = [2, 1], strides = [1, 1]} : vector<2x4xf32> to vector<2x1xf32>
    %39 = vector.extract_strided_slice %31 {offsets = [1, 0], sizes = [1, 256], strides = [1, 1]} : vector<4x256xf32> to vector<1x256xf32>
    %40 = vector.broadcast %38 : vector<2x1xf32> to vector<2x256xf32>
    %41 = vector.broadcast %39 : vector<1x256xf32> to vector<2x256xf32>
    %42 = arith.mulf %40, %41 : vector<2x256xf32>
    %43 = arith.addf %37, %42 : vector<2x256xf32>
    %44 = vector.extract_strided_slice %32 {offsets = [0, 2], sizes = [2, 1], strides = [1, 1]} : vector<2x4xf32> to vector<2x1xf32>
    %45 = vector.extract_strided_slice %31 {offsets = [2, 0], sizes = [1, 256], strides = [1, 1]} : vector<4x256xf32> to vector<1x256xf32>
    %46 = vector.broadcast %44 : vector<2x1xf32> to vector<2x256xf32>
    %47 = vector.broadcast %45 : vector<1x256xf32> to vector<2x256xf32>
    %48 = arith.mulf %46, %47 : vector<2x256xf32>
    %49 = arith.addf %43, %48 : vector<2x256xf32>
    %50 = vector.extract_strided_slice %32 {offsets = [0, 3], sizes = [2, 1], strides = [1, 1]} : vector<2x4xf32> to vector<2x1xf32>
    %51 = vector.extract_strided_slice %31 {offsets = [3, 0], sizes = [1, 256], strides = [1, 1]} : vector<4x256xf32> to vector<1x256xf32>
    %52 = vector.broadcast %50 : vector<2x1xf32> to vector<2x256xf32>
    %53 = vector.broadcast %51 : vector<1x256xf32> to vector<2x256xf32>
    %54 = arith.mulf %52, %53 : vector<2x256xf32>
    %55 = arith.addf %49, %54 : vector<2x256xf32>
    %cst = arith.constant dense<0.000000e+00> : vector<2xf32>
    %56 = vector.multi_reduction <add>, %55, %cst [1] : vector<2x256xf32> to vector<2xf32>
    %57 = vector.shape_cast %56 : vector<2xf32> to vector<2x1xf32>
    %cst_9 = arith.constant 2.560000e+02 : f32
    %58 = vector.broadcast %cst_9 : f32 to vector<2x1xf32>
    %59 = arith.divf %57, %58 : vector<2x1xf32>
    %60 = arith.mulf %55, %55 : vector<2x256xf32>
    %cst_10 = arith.constant dense<0.000000e+00> : vector<2xf32>
    %61 = vector.multi_reduction <add>, %60, %cst_10 [1] : vector<2x256xf32> to vector<2xf32>
    %62 = vector.shape_cast %61 : vector<2xf32> to vector<2x1xf32>
    %cst_11 = arith.constant 2.560000e+02 : f32
    %63 = vector.broadcast %cst_11 : f32 to vector<2x1xf32>
    %64 = arith.divf %62, %63 : vector<2x1xf32>
    %65 = arith.mulf %59, %59 : vector<2x1xf32>
    %66 = arith.subf %64, %65 : vector<2x1xf32>
    %67 = vector.extract_strided_slice %0 {offsets = [0, 35], sizes = [2, 1], strides = [1, 1]} : vector<4x47xf32> to vector<2x1xf32>
    %cst_12 = arith.constant 9.99999974E-6 : f32
    %68 = vector.broadcast %cst_12 : f32 to vector<2x1xf32>
    %69 = arith.addf %66, %68 : vector<2x1xf32>
    %70 = math.rsqrt %69 : vector<2x1xf32>
    %71 = arith.mulf %67, %70 : vector<2x1xf32>
    %72 = vector.broadcast %71 : vector<2x1xf32> to vector<2x256xf32>
    %73 = arith.mulf %55, %72 : vector<2x256xf32>
    %74 = vector.extract_strided_slice %0 {offsets = [0, 36], sizes = [2, 1], strides = [1, 1]} : vector<4x47xf32> to vector<2x1xf32>
    %75 = arith.mulf %59, %71 : vector<2x1xf32>
    %76 = arith.subf %74, %75 : vector<2x1xf32>
    %77 = vector.broadcast %76 : vector<2x1xf32> to vector<2x256xf32>
    %78 = arith.addf %73, %77 : vector<2x256xf32>
    %79 = vector.extract_strided_slice %0 {offsets = [0, 8], sizes = [2, 9], strides = [1, 1]} : vector<4x47xf32> to vector<2x9xf32>
    %c17_i32 = arith.constant 17 : i32
    %80 = tpu.dynamic_rotate %78 by %c17_i32 dim 1 : vector<2x256xf32>, i32 -> vector<2x256xf32>
    %cst_13 = arith.constant 0.000000e+00 : f32
    %81 = vector.shape_cast %26 : vector<1x256xi1> to vector<1x256xi1>
    %82 = vector.broadcast %81 : vector<1x256xi1> to vector<2x256xi1>
    %83 = vector.broadcast %cst_13 : f32 to vector<2x256xf32>
    %84 = arith.select %82, %80, %83 : vector<2x256xi1>, vector<2x256xf32>
    %85 = vector.extract_strided_slice %79 {offsets = [0, 0], sizes = [2, 1], strides = [1, 1]} : vector<2x9xf32> to vector<2x1xf32>
    %86 = vector.broadcast %85 : vector<2x1xf32> to vector<2x256xf32>
    %87 = arith.mulf %84, %86 : vector<2x256xf32>
    %c16_i32_14 = arith.constant 16 : i32
    %88 = tpu.dynamic_rotate %78 by %c16_i32_14 dim 1 : vector<2x256xf32>, i32 -> vector<2x256xf32>
    %cst_15 = arith.constant 0.000000e+00 : f32
    %89 = vector.shape_cast %19 : vector<1x256xi1> to vector<1x256xi1>
    %90 = vector.broadcast %89 : vector<1x256xi1> to vector<2x256xi1>
    %91 = vector.broadcast %cst_15 : f32 to vector<2x256xf32>
    %92 = arith.select %90, %88, %91 : vector<2x256xi1>, vector<2x256xf32>
    %93 = vector.extract_strided_slice %79 {offsets = [0, 1], sizes = [2, 1], strides = [1, 1]} : vector<2x9xf32> to vector<2x1xf32>
    %94 = vector.broadcast %93 : vector<2x1xf32> to vector<2x256xf32>
    %95 = arith.mulf %92, %94 : vector<2x256xf32>
    %96 = arith.addf %87, %95 : vector<2x256xf32>
    %c15_i32 = arith.constant 15 : i32
    %97 = tpu.dynamic_rotate %78 by %c15_i32 dim 1 : vector<2x256xf32>, i32 -> vector<2x256xf32>
    %cst_16 = arith.constant 0.000000e+00 : f32
    %98 = vector.shape_cast %27 : vector<1x256xi1> to vector<1x256xi1>
    %99 = vector.broadcast %98 : vector<1x256xi1> to vector<2x256xi1>
    %100 = vector.broadcast %cst_16 : f32 to vector<2x256xf32>
    %101 = arith.select %99, %97, %100 : vector<2x256xi1>, vector<2x256xf32>
    %102 = vector.extract_strided_slice %79 {offsets = [0, 2], sizes = [2, 1], strides = [1, 1]} : vector<2x9xf32> to vector<2x1xf32>
    %103 = vector.broadcast %102 : vector<2x1xf32> to vector<2x256xf32>
    %104 = arith.mulf %101, %103 : vector<2x256xf32>
    %105 = arith.addf %96, %104 : vector<2x256xf32>
    %c1_i32_17 = arith.constant 1 : i32
    %106 = tpu.dynamic_rotate %78 by %c1_i32_17 dim 1 : vector<2x256xf32>, i32 -> vector<2x256xf32>
    %cst_18 = arith.constant 0.000000e+00 : f32
    %107 = vector.shape_cast %23 : vector<1x256xi1> to vector<1x256xi1>
    %108 = vector.broadcast %107 : vector<1x256xi1> to vector<2x256xi1>
    %109 = vector.broadcast %cst_18 : f32 to vector<2x256xf32>
    %110 = arith.select %108, %106, %109 : vector<2x256xi1>, vector<2x256xf32>
    %111 = vector.extract_strided_slice %79 {offsets = [0, 3], sizes = [2, 1], strides = [1, 1]} : vector<2x9xf32> to vector<2x1xf32>
    %112 = vector.broadcast %111 : vector<2x1xf32> to vector<2x256xf32>
    %113 = arith.mulf %110, %112 : vector<2x256xf32>
    %114 = arith.addf %105, %113 : vector<2x256xf32>
    %115 = vector.extract_strided_slice %79 {offsets = [0, 4], sizes = [2, 1], strides = [1, 1]} : vector<2x9xf32> to vector<2x1xf32>
    %116 = vector.broadcast %115 : vector<2x1xf32> to vector<2x256xf32>
    %117 = arith.mulf %78, %116 : vector<2x256xf32>
    %118 = arith.addf %114, %117 : vector<2x256xf32>
    %c255_i32 = arith.constant 255 : i32
    %119 = tpu.dynamic_rotate %78 by %c255_i32 dim 1 : vector<2x256xf32>, i32 -> vector<2x256xf32>
    %cst_19 = arith.constant 0.000000e+00 : f32
    %120 = vector.shape_cast %25 : vector<1x256xi1> to vector<1x256xi1>
    %121 = vector.broadcast %120 : vector<1x256xi1> to vector<2x256xi1>
    %122 = vector.broadcast %cst_19 : f32 to vector<2x256xf32>
    %123 = arith.select %121, %119, %122 : vector<2x256xi1>, vector<2x256xf32>
    %124 = vector.extract_strided_slice %79 {offsets = [0, 5], sizes = [2, 1], strides = [1, 1]} : vector<2x9xf32> to vector<2x1xf32>
    %125 = vector.broadcast %124 : vector<2x1xf32> to vector<2x256xf32>
    %126 = arith.mulf %123, %125 : vector<2x256xf32>
    %127 = arith.addf %118, %126 : vector<2x256xf32>
    %c241_i32 = arith.constant 241 : i32
    %128 = tpu.dynamic_rotate %78 by %c241_i32 dim 1 : vector<2x256xf32>, i32 -> vector<2x256xf32>
    %cst_20 = arith.constant 0.000000e+00 : f32
    %129 = vector.shape_cast %28 : vector<1x256xi1> to vector<1x256xi1>
    %130 = vector.broadcast %129 : vector<1x256xi1> to vector<2x256xi1>
    %131 = vector.broadcast %cst_20 : f32 to vector<2x256xf32>
    %132 = arith.select %130, %128, %131 : vector<2x256xi1>, vector<2x256xf32>
    %133 = vector.extract_strided_slice %79 {offsets = [0, 6], sizes = [2, 1], strides = [1, 1]} : vector<2x9xf32> to vector<2x1xf32>
    %134 = vector.broadcast %133 : vector<2x1xf32> to vector<2x256xf32>
    %135 = arith.mulf %132, %134 : vector<2x256xf32>
    %136 = arith.addf %127, %135 : vector<2x256xf32>
    %c240_i32_21 = arith.constant 240 : i32
    %137 = tpu.dynamic_rotate %78 by %c240_i32_21 dim 1 : vector<2x256xf32>, i32 -> vector<2x256xf32>
    %cst_22 = arith.constant 0.000000e+00 : f32
    %138 = vector.shape_cast %21 : vector<1x256xi1> to vector<1x256xi1>
    %139 = vector.broadcast %138 : vector<1x256xi1> to vector<2x256xi1>
    %140 = vector.broadcast %cst_22 : f32 to vector<2x256xf32>
    %141 = arith.select %139, %137, %140 : vector<2x256xi1>, vector<2x256xf32>
    %142 = vector.extract_strided_slice %79 {offsets = [0, 7], sizes = [2, 1], strides = [1, 1]} : vector<2x9xf32> to vector<2x1xf32>
    %143 = vector.broadcast %142 : vector<2x1xf32> to vector<2x256xf32>
    %144 = arith.mulf %141, %143 : vector<2x256xf32>
    %145 = arith.addf %136, %144 : vector<2x256xf32>
    %c239_i32 = arith.constant 239 : i32
    %146 = tpu.dynamic_rotate %78 by %c239_i32 dim 1 : vector<2x256xf32>, i32 -> vector<2x256xf32>
    %cst_23 = arith.constant 0.000000e+00 : f32
    %147 = vector.shape_cast %29 : vector<1x256xi1> to vector<1x256xi1>
    %148 = vector.broadcast %147 : vector<1x256xi1> to vector<2x256xi1>
    %149 = vector.broadcast %cst_23 : f32 to vector<2x256xf32>
    %150 = arith.select %148, %146, %149 : vector<2x256xi1>, vector<2x256xf32>
    %151 = vector.extract_strided_slice %79 {offsets = [0, 8], sizes = [2, 1], strides = [1, 1]} : vector<2x9xf32> to vector<2x1xf32>
    %152 = vector.broadcast %151 : vector<2x1xf32> to vector<2x256xf32>
    %153 = arith.mulf %150, %152 : vector<2x256xf32>
    %154 = arith.addf %145, %153 : vector<2x256xf32>
    %cst_24 = arith.constant dense<0.000000e+00> : vector<2xf32>
    %155 = vector.multi_reduction <add>, %154, %cst_24 [1] : vector<2x256xf32> to vector<2xf32>
    %156 = vector.shape_cast %155 : vector<2xf32> to vector<2x1xf32>
    %cst_25 = arith.constant 2.560000e+02 : f32
    %157 = vector.broadcast %cst_25 : f32 to vector<2x1xf32>
    %158 = arith.divf %156, %157 : vector<2x1xf32>
    %159 = arith.mulf %154, %154 : vector<2x256xf32>
    %cst_26 = arith.constant dense<0.000000e+00> : vector<2xf32>
    %160 = vector.multi_reduction <add>, %159, %cst_26 [1] : vector<2x256xf32> to vector<2xf32>
    %161 = vector.shape_cast %160 : vector<2xf32> to vector<2x1xf32>
    %cst_27 = arith.constant 2.560000e+02 : f32
    %162 = vector.broadcast %cst_27 : f32 to vector<2x1xf32>
    %163 = arith.divf %161, %162 : vector<2x1xf32>
    %164 = arith.mulf %158, %158 : vector<2x1xf32>
    %165 = arith.subf %163, %164 : vector<2x1xf32>
    %166 = vector.extract_strided_slice %0 {offsets = [0, 37], sizes = [2, 1], strides = [1, 1]} : vector<4x47xf32> to vector<2x1xf32>
    %cst_28 = arith.constant 9.99999974E-6 : f32
    %167 = vector.broadcast %cst_28 : f32 to vector<2x1xf32>
    %168 = arith.addf %165, %167 : vector<2x1xf32>
    %169 = math.rsqrt %168 : vector<2x1xf32>
    %170 = arith.mulf %166, %169 : vector<2x1xf32>
    %171 = vector.broadcast %170 : vector<2x1xf32> to vector<2x256xf32>
    %172 = arith.mulf %154, %171 : vector<2x256xf32>
    %173 = vector.extract_strided_slice %0 {offsets = [0, 38], sizes = [2, 1], strides = [1, 1]} : vector<4x47xf32> to vector<2x1xf32>
    %174 = arith.mulf %158, %170 : vector<2x1xf32>
    %175 = arith.subf %173, %174 : vector<2x1xf32>
    %176 = vector.broadcast %175 : vector<2x1xf32> to vector<2x256xf32>
    %177 = arith.addf %172, %176 : vector<2x256xf32>
    %cst_29 = arith.constant 0.000000e+00 : f32
    %178 = vector.broadcast %cst_29 : f32 to vector<2x256xf32>
    %179 = arith.cmpf ogt, %177, %178 : vector<2x256xf32>
    %180 = math.exp %177 : vector<2x256xf32>
    %cst_30 = arith.constant 1.000000e+00 : f32
    %181 = vector.broadcast %cst_30 : f32 to vector<2x256xf32>
    %182 = arith.subf %180, %181 : vector<2x256xf32>
    %183 = arith.select %179, %177, %182 : vector<2x256xi1>, vector<2x256xf32>
    %184 = vector.extract_strided_slice %0 {offsets = [0, 4], sizes = [4, 2], strides = [1, 1]} : vector<4x47xf32> to vector<4x2xf32>
    %185 = vector.extract_strided_slice %184 {offsets = [0, 0], sizes = [4, 1], strides = [1, 1]} : vector<4x2xf32> to vector<4x1xf32>
    %186 = vector.extract_strided_slice %183 {offsets = [0, 0], sizes = [1, 256], strides = [1, 1]} : vector<2x256xf32> to vector<1x256xf32>
    %187 = vector.broadcast %185 : vector<4x1xf32> to vector<4x256xf32>
    %188 = vector.broadcast %186 : vector<1x256xf32> to vector<4x256xf32>
    %189 = arith.mulf %187, %188 : vector<4x256xf32>
    %190 = vector.extract_strided_slice %184 {offsets = [0, 1], sizes = [4, 1], strides = [1, 1]} : vector<4x2xf32> to vector<4x1xf32>
    %191 = vector.extract_strided_slice %183 {offsets = [1, 0], sizes = [1, 256], strides = [1, 1]} : vector<2x256xf32> to vector<1x256xf32>
    %192 = vector.broadcast %190 : vector<4x1xf32> to vector<4x256xf32>
    %193 = vector.broadcast %191 : vector<1x256xf32> to vector<4x256xf32>
    %194 = arith.mulf %192, %193 : vector<4x256xf32>
    %195 = arith.addf %189, %194 : vector<4x256xf32>
    %cst_31 = arith.constant dense<0.000000e+00> : vector<4xf32>
    %196 = vector.multi_reduction <add>, %195, %cst_31 [1] : vector<4x256xf32> to vector<4xf32>
    %197 = vector.shape_cast %196 : vector<4xf32> to vector<4x1xf32>
    %cst_32 = arith.constant 2.560000e+02 : f32
    %198 = vector.broadcast %cst_32 : f32 to vector<4x1xf32>
    %199 = arith.divf %197, %198 : vector<4x1xf32>
    %200 = arith.mulf %195, %195 : vector<4x256xf32>
    %cst_33 = arith.constant dense<0.000000e+00> : vector<4xf32>
    %201 = vector.multi_reduction <add>, %200, %cst_33 [1] : vector<4x256xf32> to vector<4xf32>
    %202 = vector.shape_cast %201 : vector<4xf32> to vector<4x1xf32>
    %cst_34 = arith.constant 2.560000e+02 : f32
    %203 = vector.broadcast %cst_34 : f32 to vector<4x1xf32>
    %204 = arith.divf %202, %203 : vector<4x1xf32>
    %205 = arith.mulf %199, %199 : vector<4x1xf32>
    %206 = arith.subf %204, %205 : vector<4x1xf32>
    %207 = vector.extract_strided_slice %0 {offsets = [0, 39], sizes = [4, 1], strides = [1, 1]} : vector<4x47xf32> to vector<4x1xf32>
    %cst_35 = arith.constant 9.99999974E-6 : f32
    %208 = vector.broadcast %cst_35 : f32 to vector<4x1xf32>
    %209 = arith.addf %206, %208 : vector<4x1xf32>
    %210 = math.rsqrt %209 : vector<4x1xf32>
    %211 = arith.mulf %207, %210 : vector<4x1xf32>
    %212 = vector.broadcast %211 : vector<4x1xf32> to vector<4x256xf32>
    %213 = arith.mulf %195, %212 : vector<4x256xf32>
    %214 = vector.extract_strided_slice %0 {offsets = [0, 40], sizes = [4, 1], strides = [1, 1]} : vector<4x47xf32> to vector<4x1xf32>
    %215 = arith.mulf %199, %211 : vector<4x1xf32>
    %216 = arith.subf %214, %215 : vector<4x1xf32>
    %217 = vector.broadcast %216 : vector<4x1xf32> to vector<4x256xf32>
    %218 = arith.addf %213, %217 : vector<4x256xf32>
    %219 = vector.extract_strided_slice %0 {offsets = [0, 17], sizes = [4, 9], strides = [1, 1]} : vector<4x47xf32> to vector<4x9xf32>
    %c17_i32_36 = arith.constant 17 : i32
    %220 = tpu.dynamic_rotate %218 by %c17_i32_36 dim 1 : vector<4x256xf32>, i32 -> vector<4x256xf32>
    %cst_37 = arith.constant 0.000000e+00 : f32
    %221 = vector.shape_cast %26 : vector<1x256xi1> to vector<1x256xi1>
    %222 = vector.broadcast %221 : vector<1x256xi1> to vector<4x256xi1>
    %223 = vector.broadcast %cst_37 : f32 to vector<4x256xf32>
    %224 = arith.select %222, %220, %223 : vector<4x256xi1>, vector<4x256xf32>
    %225 = vector.extract_strided_slice %219 {offsets = [0, 0], sizes = [4, 1], strides = [1, 1]} : vector<4x9xf32> to vector<4x1xf32>
    %226 = vector.broadcast %225 : vector<4x1xf32> to vector<4x256xf32>
    %227 = arith.mulf %224, %226 : vector<4x256xf32>
    %c16_i32_38 = arith.constant 16 : i32
    %228 = tpu.dynamic_rotate %218 by %c16_i32_38 dim 1 : vector<4x256xf32>, i32 -> vector<4x256xf32>
    %cst_39 = arith.constant 0.000000e+00 : f32
    %229 = vector.shape_cast %19 : vector<1x256xi1> to vector<1x256xi1>
    %230 = vector.broadcast %229 : vector<1x256xi1> to vector<4x256xi1>
    %231 = vector.broadcast %cst_39 : f32 to vector<4x256xf32>
    %232 = arith.select %230, %228, %231 : vector<4x256xi1>, vector<4x256xf32>
    %233 = vector.extract_strided_slice %219 {offsets = [0, 1], sizes = [4, 1], strides = [1, 1]} : vector<4x9xf32> to vector<4x1xf32>
    %234 = vector.broadcast %233 : vector<4x1xf32> to vector<4x256xf32>
    %235 = arith.mulf %232, %234 : vector<4x256xf32>
    %236 = arith.addf %227, %235 : vector<4x256xf32>
    %c15_i32_40 = arith.constant 15 : i32
    %237 = tpu.dynamic_rotate %218 by %c15_i32_40 dim 1 : vector<4x256xf32>, i32 -> vector<4x256xf32>
    %cst_41 = arith.constant 0.000000e+00 : f32
    %238 = vector.shape_cast %27 : vector<1x256xi1> to vector<1x256xi1>
    %239 = vector.broadcast %238 : vector<1x256xi1> to vector<4x256xi1>
    %240 = vector.broadcast %cst_41 : f32 to vector<4x256xf32>
    %241 = arith.select %239, %237, %240 : vector<4x256xi1>, vector<4x256xf32>
    %242 = vector.extract_strided_slice %219 {offsets = [0, 2], sizes = [4, 1], strides = [1, 1]} : vector<4x9xf32> to vector<4x1xf32>
    %243 = vector.broadcast %242 : vector<4x1xf32> to vector<4x256xf32>
    %244 = arith.mulf %241, %243 : vector<4x256xf32>
    %245 = arith.addf %236, %244 : vector<4x256xf32>
    %c1_i32_42 = arith.constant 1 : i32
    %246 = tpu.dynamic_rotate %218 by %c1_i32_42 dim 1 : vector<4x256xf32>, i32 -> vector<4x256xf32>
    %cst_43 = arith.constant 0.000000e+00 : f32
    %247 = vector.shape_cast %23 : vector<1x256xi1> to vector<1x256xi1>
    %248 = vector.broadcast %247 : vector<1x256xi1> to vector<4x256xi1>
    %249 = vector.broadcast %cst_43 : f32 to vector<4x256xf32>
    %250 = arith.select %248, %246, %249 : vector<4x256xi1>, vector<4x256xf32>
    %251 = vector.extract_strided_slice %219 {offsets = [0, 3], sizes = [4, 1], strides = [1, 1]} : vector<4x9xf32> to vector<4x1xf32>
    %252 = vector.broadcast %251 : vector<4x1xf32> to vector<4x256xf32>
    %253 = arith.mulf %250, %252 : vector<4x256xf32>
    %254 = arith.addf %245, %253 : vector<4x256xf32>
    %255 = vector.extract_strided_slice %219 {offsets = [0, 4], sizes = [4, 1], strides = [1, 1]} : vector<4x9xf32> to vector<4x1xf32>
    %256 = vector.broadcast %255 : vector<4x1xf32> to vector<4x256xf32>
    %257 = arith.mulf %218, %256 : vector<4x256xf32>
    %258 = arith.addf %254, %257 : vector<4x256xf32>
    %c255_i32_44 = arith.constant 255 : i32
    %259 = tpu.dynamic_rotate %218 by %c255_i32_44 dim 1 : vector<4x256xf32>, i32 -> vector<4x256xf32>
    %cst_45 = arith.constant 0.000000e+00 : f32
    %260 = vector.shape_cast %25 : vector<1x256xi1> to vector<1x256xi1>
    %261 = vector.broadcast %260 : vector<1x256xi1> to vector<4x256xi1>
    %262 = vector.broadcast %cst_45 : f32 to vector<4x256xf32>
    %263 = arith.select %261, %259, %262 : vector<4x256xi1>, vector<4x256xf32>
    %264 = vector.extract_strided_slice %219 {offsets = [0, 5], sizes = [4, 1], strides = [1, 1]} : vector<4x9xf32> to vector<4x1xf32>
    %265 = vector.broadcast %264 : vector<4x1xf32> to vector<4x256xf32>
    %266 = arith.mulf %263, %265 : vector<4x256xf32>
    %267 = arith.addf %258, %266 : vector<4x256xf32>
    %c241_i32_46 = arith.constant 241 : i32
    %268 = tpu.dynamic_rotate %218 by %c241_i32_46 dim 1 : vector<4x256xf32>, i32 -> vector<4x256xf32>
    %cst_47 = arith.constant 0.000000e+00 : f32
    %269 = vector.shape_cast %28 : vector<1x256xi1> to vector<1x256xi1>
    %270 = vector.broadcast %269 : vector<1x256xi1> to vector<4x256xi1>
    %271 = vector.broadcast %cst_47 : f32 to vector<4x256xf32>
    %272 = arith.select %270, %268, %271 : vector<4x256xi1>, vector<4x256xf32>
    %273 = vector.extract_strided_slice %219 {offsets = [0, 6], sizes = [4, 1], strides = [1, 1]} : vector<4x9xf32> to vector<4x1xf32>
    %274 = vector.broadcast %273 : vector<4x1xf32> to vector<4x256xf32>
    %275 = arith.mulf %272, %274 : vector<4x256xf32>
    %276 = arith.addf %267, %275 : vector<4x256xf32>
    %c240_i32_48 = arith.constant 240 : i32
    %277 = tpu.dynamic_rotate %218 by %c240_i32_48 dim 1 : vector<4x256xf32>, i32 -> vector<4x256xf32>
    %cst_49 = arith.constant 0.000000e+00 : f32
    %278 = vector.shape_cast %21 : vector<1x256xi1> to vector<1x256xi1>
    %279 = vector.broadcast %278 : vector<1x256xi1> to vector<4x256xi1>
    %280 = vector.broadcast %cst_49 : f32 to vector<4x256xf32>
    %281 = arith.select %279, %277, %280 : vector<4x256xi1>, vector<4x256xf32>
    %282 = vector.extract_strided_slice %219 {offsets = [0, 7], sizes = [4, 1], strides = [1, 1]} : vector<4x9xf32> to vector<4x1xf32>
    %283 = vector.broadcast %282 : vector<4x1xf32> to vector<4x256xf32>
    %284 = arith.mulf %281, %283 : vector<4x256xf32>
    %285 = arith.addf %276, %284 : vector<4x256xf32>
    %c239_i32_50 = arith.constant 239 : i32
    %286 = tpu.dynamic_rotate %218 by %c239_i32_50 dim 1 : vector<4x256xf32>, i32 -> vector<4x256xf32>
    %cst_51 = arith.constant 0.000000e+00 : f32
    %287 = vector.shape_cast %29 : vector<1x256xi1> to vector<1x256xi1>
    %288 = vector.broadcast %287 : vector<1x256xi1> to vector<4x256xi1>
    %289 = vector.broadcast %cst_51 : f32 to vector<4x256xf32>
    %290 = arith.select %288, %286, %289 : vector<4x256xi1>, vector<4x256xf32>
    %291 = vector.extract_strided_slice %219 {offsets = [0, 8], sizes = [4, 1], strides = [1, 1]} : vector<4x9xf32> to vector<4x1xf32>
    %292 = vector.broadcast %291 : vector<4x1xf32> to vector<4x256xf32>
    %293 = arith.mulf %290, %292 : vector<4x256xf32>
    %294 = arith.addf %285, %293 : vector<4x256xf32>
    %cst_52 = arith.constant dense<0.000000e+00> : vector<4xf32>
    %295 = vector.multi_reduction <add>, %294, %cst_52 [1] : vector<4x256xf32> to vector<4xf32>
    %296 = vector.shape_cast %295 : vector<4xf32> to vector<4x1xf32>
    %cst_53 = arith.constant 2.560000e+02 : f32
    %297 = vector.broadcast %cst_53 : f32 to vector<4x1xf32>
    %298 = arith.divf %296, %297 : vector<4x1xf32>
    %299 = arith.mulf %294, %294 : vector<4x256xf32>
    %cst_54 = arith.constant dense<0.000000e+00> : vector<4xf32>
    %300 = vector.multi_reduction <add>, %299, %cst_54 [1] : vector<4x256xf32> to vector<4xf32>
    %301 = vector.shape_cast %300 : vector<4xf32> to vector<4x1xf32>
    %cst_55 = arith.constant 2.560000e+02 : f32
    %302 = vector.broadcast %cst_55 : f32 to vector<4x1xf32>
    %303 = arith.divf %301, %302 : vector<4x1xf32>
    %304 = arith.mulf %298, %298 : vector<4x1xf32>
    %305 = arith.subf %303, %304 : vector<4x1xf32>
    %306 = vector.extract_strided_slice %0 {offsets = [0, 41], sizes = [4, 1], strides = [1, 1]} : vector<4x47xf32> to vector<4x1xf32>
    %cst_56 = arith.constant 9.99999974E-6 : f32
    %307 = vector.broadcast %cst_56 : f32 to vector<4x1xf32>
    %308 = arith.addf %305, %307 : vector<4x1xf32>
    %309 = math.rsqrt %308 : vector<4x1xf32>
    %310 = arith.mulf %306, %309 : vector<4x1xf32>
    %311 = vector.broadcast %310 : vector<4x1xf32> to vector<4x256xf32>
    %312 = arith.mulf %294, %311 : vector<4x256xf32>
    %313 = vector.extract_strided_slice %0 {offsets = [0, 42], sizes = [4, 1], strides = [1, 1]} : vector<4x47xf32> to vector<4x1xf32>
    %314 = arith.mulf %298, %310 : vector<4x1xf32>
    %315 = arith.subf %313, %314 : vector<4x1xf32>
    %316 = vector.broadcast %315 : vector<4x1xf32> to vector<4x256xf32>
    %317 = arith.addf %312, %316 : vector<4x256xf32>
    %318 = vector.extract_strided_slice %317 {offsets = [2, 0], sizes = [2, 256], strides = [1, 1]} : vector<4x256xf32> to vector<2x256xf32>
    %319 = math.absf %318 : vector<2x256xf32>
    %cst_57 = arith.constant 0.000000e+00 : f32
    %320 = vector.broadcast %cst_57 : f32 to vector<2x256xf32>
    %321 = arith.subf %320, %319 : vector<2x256xf32>
    %322 = math.exp %321 : vector<2x256xf32>
    %cst_58 = arith.constant 0.000000e+00 : f32
    %323 = vector.broadcast %cst_58 : f32 to vector<2x256xf32>
    %324 = arith.cmpf oge, %318, %323 : vector<2x256xf32>
    %cst_59 = arith.constant 1.000000e+00 : f32
    %325 = vector.broadcast %cst_59 : f32 to vector<2x256xf32>
    %326 = arith.select %324, %325, %322 : vector<2x256xi1>, vector<2x256xf32>
    %cst_60 = arith.constant 1.000000e+00 : f32
    %327 = vector.broadcast %cst_60 : f32 to vector<2x256xf32>
    %328 = arith.addf %327, %322 : vector<2x256xf32>
    %329 = arith.divf %326, %328 : vector<2x256xf32>
    %330 = vector.extract_strided_slice %317 {offsets = [0, 0], sizes = [2, 256], strides = [1, 1]} : vector<4x256xf32> to vector<2x256xf32>
    %331 = math.tanh %330 : vector<2x256xf32>
    %332 = arith.mulf %329, %331 : vector<2x256xf32>
    %333 = vector.extract_strided_slice %0 {offsets = [0, 6], sizes = [4, 2], strides = [1, 1]} : vector<4x47xf32> to vector<4x2xf32>
    %334 = vector.extract_strided_slice %333 {offsets = [0, 0], sizes = [4, 1], strides = [1, 1]} : vector<4x2xf32> to vector<4x1xf32>
    %335 = vector.extract_strided_slice %332 {offsets = [0, 0], sizes = [1, 256], strides = [1, 1]} : vector<2x256xf32> to vector<1x256xf32>
    %336 = vector.broadcast %334 : vector<4x1xf32> to vector<4x256xf32>
    %337 = vector.broadcast %335 : vector<1x256xf32> to vector<4x256xf32>
    %338 = arith.mulf %336, %337 : vector<4x256xf32>
    %339 = vector.extract_strided_slice %333 {offsets = [0, 1], sizes = [4, 1], strides = [1, 1]} : vector<4x2xf32> to vector<4x1xf32>
    %340 = vector.extract_strided_slice %332 {offsets = [1, 0], sizes = [1, 256], strides = [1, 1]} : vector<2x256xf32> to vector<1x256xf32>
    %341 = vector.broadcast %339 : vector<4x1xf32> to vector<4x256xf32>
    %342 = vector.broadcast %340 : vector<1x256xf32> to vector<4x256xf32>
    %343 = arith.mulf %341, %342 : vector<4x256xf32>
    %344 = arith.addf %338, %343 : vector<4x256xf32>
    %cst_61 = arith.constant dense<0.000000e+00> : vector<4xf32>
    %345 = vector.multi_reduction <add>, %344, %cst_61 [1] : vector<4x256xf32> to vector<4xf32>
    %346 = vector.shape_cast %345 : vector<4xf32> to vector<4x1xf32>
    %cst_62 = arith.constant 2.560000e+02 : f32
    %347 = vector.broadcast %cst_62 : f32 to vector<4x1xf32>
    %348 = arith.divf %346, %347 : vector<4x1xf32>
    %349 = arith.mulf %344, %344 : vector<4x256xf32>
    %cst_63 = arith.constant dense<0.000000e+00> : vector<4xf32>
    %350 = vector.multi_reduction <add>, %349, %cst_63 [1] : vector<4x256xf32> to vector<4xf32>
    %351 = vector.shape_cast %350 : vector<4xf32> to vector<4x1xf32>
    %cst_64 = arith.constant 2.560000e+02 : f32
    %352 = vector.broadcast %cst_64 : f32 to vector<4x1xf32>
    %353 = arith.divf %351, %352 : vector<4x1xf32>
    %354 = arith.mulf %348, %348 : vector<4x1xf32>
    %355 = arith.subf %353, %354 : vector<4x1xf32>
    %356 = vector.extract_strided_slice %0 {offsets = [0, 43], sizes = [4, 1], strides = [1, 1]} : vector<4x47xf32> to vector<4x1xf32>
    %cst_65 = arith.constant 9.99999974E-6 : f32
    %357 = vector.broadcast %cst_65 : f32 to vector<4x1xf32>
    %358 = arith.addf %355, %357 : vector<4x1xf32>
    %359 = math.rsqrt %358 : vector<4x1xf32>
    %360 = arith.mulf %356, %359 : vector<4x1xf32>
    %361 = vector.broadcast %360 : vector<4x1xf32> to vector<4x256xf32>
    %362 = arith.mulf %344, %361 : vector<4x256xf32>
    %363 = vector.extract_strided_slice %0 {offsets = [0, 44], sizes = [4, 1], strides = [1, 1]} : vector<4x47xf32> to vector<4x1xf32>
    %364 = arith.mulf %348, %360 : vector<4x1xf32>
    %365 = arith.subf %363, %364 : vector<4x1xf32>
    %366 = vector.broadcast %365 : vector<4x1xf32> to vector<4x256xf32>
    %367 = arith.addf %362, %366 : vector<4x256xf32>
    %368 = vector.extract_strided_slice %0 {offsets = [0, 26], sizes = [4, 9], strides = [1, 1]} : vector<4x47xf32> to vector<4x9xf32>
    %c17_i32_66 = arith.constant 17 : i32
    %369 = tpu.dynamic_rotate %367 by %c17_i32_66 dim 1 : vector<4x256xf32>, i32 -> vector<4x256xf32>
    %cst_67 = arith.constant 0.000000e+00 : f32
    %370 = vector.shape_cast %26 : vector<1x256xi1> to vector<1x256xi1>
    %371 = vector.broadcast %370 : vector<1x256xi1> to vector<4x256xi1>
    %372 = vector.broadcast %cst_67 : f32 to vector<4x256xf32>
    %373 = arith.select %371, %369, %372 : vector<4x256xi1>, vector<4x256xf32>
    %374 = vector.extract_strided_slice %368 {offsets = [0, 0], sizes = [4, 1], strides = [1, 1]} : vector<4x9xf32> to vector<4x1xf32>
    %375 = vector.broadcast %374 : vector<4x1xf32> to vector<4x256xf32>
    %376 = arith.mulf %373, %375 : vector<4x256xf32>
    %c16_i32_68 = arith.constant 16 : i32
    %377 = tpu.dynamic_rotate %367 by %c16_i32_68 dim 1 : vector<4x256xf32>, i32 -> vector<4x256xf32>
    %cst_69 = arith.constant 0.000000e+00 : f32
    %378 = vector.shape_cast %19 : vector<1x256xi1> to vector<1x256xi1>
    %379 = vector.broadcast %378 : vector<1x256xi1> to vector<4x256xi1>
    %380 = vector.broadcast %cst_69 : f32 to vector<4x256xf32>
    %381 = arith.select %379, %377, %380 : vector<4x256xi1>, vector<4x256xf32>
    %382 = vector.extract_strided_slice %368 {offsets = [0, 1], sizes = [4, 1], strides = [1, 1]} : vector<4x9xf32> to vector<4x1xf32>
    %383 = vector.broadcast %382 : vector<4x1xf32> to vector<4x256xf32>
    %384 = arith.mulf %381, %383 : vector<4x256xf32>
    %385 = arith.addf %376, %384 : vector<4x256xf32>
    %c15_i32_70 = arith.constant 15 : i32
    %386 = tpu.dynamic_rotate %367 by %c15_i32_70 dim 1 : vector<4x256xf32>, i32 -> vector<4x256xf32>
    %cst_71 = arith.constant 0.000000e+00 : f32
    %387 = vector.shape_cast %27 : vector<1x256xi1> to vector<1x256xi1>
    %388 = vector.broadcast %387 : vector<1x256xi1> to vector<4x256xi1>
    %389 = vector.broadcast %cst_71 : f32 to vector<4x256xf32>
    %390 = arith.select %388, %386, %389 : vector<4x256xi1>, vector<4x256xf32>
    %391 = vector.extract_strided_slice %368 {offsets = [0, 2], sizes = [4, 1], strides = [1, 1]} : vector<4x9xf32> to vector<4x1xf32>
    %392 = vector.broadcast %391 : vector<4x1xf32> to vector<4x256xf32>
    %393 = arith.mulf %390, %392 : vector<4x256xf32>
    %394 = arith.addf %385, %393 : vector<4x256xf32>
    %c1_i32_72 = arith.constant 1 : i32
    %395 = tpu.dynamic_rotate %367 by %c1_i32_72 dim 1 : vector<4x256xf32>, i32 -> vector<4x256xf32>
    %cst_73 = arith.constant 0.000000e+00 : f32
    %396 = vector.shape_cast %23 : vector<1x256xi1> to vector<1x256xi1>
    %397 = vector.broadcast %396 : vector<1x256xi1> to vector<4x256xi1>
    %398 = vector.broadcast %cst_73 : f32 to vector<4x256xf32>
    %399 = arith.select %397, %395, %398 : vector<4x256xi1>, vector<4x256xf32>
    %400 = vector.extract_strided_slice %368 {offsets = [0, 3], sizes = [4, 1], strides = [1, 1]} : vector<4x9xf32> to vector<4x1xf32>
    %401 = vector.broadcast %400 : vector<4x1xf32> to vector<4x256xf32>
    %402 = arith.mulf %399, %401 : vector<4x256xf32>
    %403 = arith.addf %394, %402 : vector<4x256xf32>
    %404 = vector.extract_strided_slice %368 {offsets = [0, 4], sizes = [4, 1], strides = [1, 1]} : vector<4x9xf32> to vector<4x1xf32>
    %405 = vector.broadcast %404 : vector<4x1xf32> to vector<4x256xf32>
    %406 = arith.mulf %367, %405 : vector<4x256xf32>
    %407 = arith.addf %403, %406 : vector<4x256xf32>
    %c255_i32_74 = arith.constant 255 : i32
    %408 = tpu.dynamic_rotate %367 by %c255_i32_74 dim 1 : vector<4x256xf32>, i32 -> vector<4x256xf32>
    %cst_75 = arith.constant 0.000000e+00 : f32
    %409 = vector.shape_cast %25 : vector<1x256xi1> to vector<1x256xi1>
    %410 = vector.broadcast %409 : vector<1x256xi1> to vector<4x256xi1>
    %411 = vector.broadcast %cst_75 : f32 to vector<4x256xf32>
    %412 = arith.select %410, %408, %411 : vector<4x256xi1>, vector<4x256xf32>
    %413 = vector.extract_strided_slice %368 {offsets = [0, 5], sizes = [4, 1], strides = [1, 1]} : vector<4x9xf32> to vector<4x1xf32>
    %414 = vector.broadcast %413 : vector<4x1xf32> to vector<4x256xf32>
    %415 = arith.mulf %412, %414 : vector<4x256xf32>
    %416 = arith.addf %407, %415 : vector<4x256xf32>
    %c241_i32_76 = arith.constant 241 : i32
    %417 = tpu.dynamic_rotate %367 by %c241_i32_76 dim 1 : vector<4x256xf32>, i32 -> vector<4x256xf32>
    %cst_77 = arith.constant 0.000000e+00 : f32
    %418 = vector.shape_cast %28 : vector<1x256xi1> to vector<1x256xi1>
    %419 = vector.broadcast %418 : vector<1x256xi1> to vector<4x256xi1>
    %420 = vector.broadcast %cst_77 : f32 to vector<4x256xf32>
    %421 = arith.select %419, %417, %420 : vector<4x256xi1>, vector<4x256xf32>
    %422 = vector.extract_strided_slice %368 {offsets = [0, 6], sizes = [4, 1], strides = [1, 1]} : vector<4x9xf32> to vector<4x1xf32>
    %423 = vector.broadcast %422 : vector<4x1xf32> to vector<4x256xf32>
    %424 = arith.mulf %421, %423 : vector<4x256xf32>
    %425 = arith.addf %416, %424 : vector<4x256xf32>
    %c240_i32_78 = arith.constant 240 : i32
    %426 = tpu.dynamic_rotate %367 by %c240_i32_78 dim 1 : vector<4x256xf32>, i32 -> vector<4x256xf32>
    %cst_79 = arith.constant 0.000000e+00 : f32
    %427 = vector.shape_cast %21 : vector<1x256xi1> to vector<1x256xi1>
    %428 = vector.broadcast %427 : vector<1x256xi1> to vector<4x256xi1>
    %429 = vector.broadcast %cst_79 : f32 to vector<4x256xf32>
    %430 = arith.select %428, %426, %429 : vector<4x256xi1>, vector<4x256xf32>
    %431 = vector.extract_strided_slice %368 {offsets = [0, 7], sizes = [4, 1], strides = [1, 1]} : vector<4x9xf32> to vector<4x1xf32>
    %432 = vector.broadcast %431 : vector<4x1xf32> to vector<4x256xf32>
    %433 = arith.mulf %430, %432 : vector<4x256xf32>
    %434 = arith.addf %425, %433 : vector<4x256xf32>
    %c239_i32_80 = arith.constant 239 : i32
    %435 = tpu.dynamic_rotate %367 by %c239_i32_80 dim 1 : vector<4x256xf32>, i32 -> vector<4x256xf32>
    %cst_81 = arith.constant 0.000000e+00 : f32
    %436 = vector.shape_cast %29 : vector<1x256xi1> to vector<1x256xi1>
    %437 = vector.broadcast %436 : vector<1x256xi1> to vector<4x256xi1>
    %438 = vector.broadcast %cst_81 : f32 to vector<4x256xf32>
    %439 = arith.select %437, %435, %438 : vector<4x256xi1>, vector<4x256xf32>
    %440 = vector.extract_strided_slice %368 {offsets = [0, 8], sizes = [4, 1], strides = [1, 1]} : vector<4x9xf32> to vector<4x1xf32>
    %441 = vector.broadcast %440 : vector<4x1xf32> to vector<4x256xf32>
    %442 = arith.mulf %439, %441 : vector<4x256xf32>
    %443 = arith.addf %434, %442 : vector<4x256xf32>
    %cst_82 = arith.constant dense<0.000000e+00> : vector<4xf32>
    %444 = vector.multi_reduction <add>, %443, %cst_82 [1] : vector<4x256xf32> to vector<4xf32>
    %445 = vector.shape_cast %444 : vector<4xf32> to vector<4x1xf32>
    %cst_83 = arith.constant 2.560000e+02 : f32
    %446 = vector.broadcast %cst_83 : f32 to vector<4x1xf32>
    %447 = arith.divf %445, %446 : vector<4x1xf32>
    %448 = arith.mulf %443, %443 : vector<4x256xf32>
    %cst_84 = arith.constant dense<0.000000e+00> : vector<4xf32>
    %449 = vector.multi_reduction <add>, %448, %cst_84 [1] : vector<4x256xf32> to vector<4xf32>
    %450 = vector.shape_cast %449 : vector<4xf32> to vector<4x1xf32>
    %cst_85 = arith.constant 2.560000e+02 : f32
    %451 = vector.broadcast %cst_85 : f32 to vector<4x1xf32>
    %452 = arith.divf %450, %451 : vector<4x1xf32>
    %453 = arith.mulf %447, %447 : vector<4x1xf32>
    %454 = arith.subf %452, %453 : vector<4x1xf32>
    %455 = vector.extract_strided_slice %0 {offsets = [0, 45], sizes = [4, 1], strides = [1, 1]} : vector<4x47xf32> to vector<4x1xf32>
    %cst_86 = arith.constant 9.99999974E-6 : f32
    %456 = vector.broadcast %cst_86 : f32 to vector<4x1xf32>
    %457 = arith.addf %454, %456 : vector<4x1xf32>
    %458 = math.rsqrt %457 : vector<4x1xf32>
    %459 = arith.mulf %455, %458 : vector<4x1xf32>
    %460 = vector.broadcast %459 : vector<4x1xf32> to vector<4x256xf32>
    %461 = arith.mulf %443, %460 : vector<4x256xf32>
    %462 = vector.extract_strided_slice %0 {offsets = [0, 46], sizes = [4, 1], strides = [1, 1]} : vector<4x47xf32> to vector<4x1xf32>
    %463 = arith.mulf %447, %459 : vector<4x1xf32>
    %464 = arith.subf %462, %463 : vector<4x1xf32>
    %465 = vector.broadcast %464 : vector<4x1xf32> to vector<4x256xf32>
    %466 = arith.addf %461, %465 : vector<4x256xf32>
    %cst_87 = arith.constant 0.000000e+00 : f32
    %467 = vector.broadcast %cst_87 : f32 to vector<4x256xf32>
    %468 = arith.cmpf ogt, %466, %467 : vector<4x256xf32>
    %469 = math.exp %466 : vector<4x256xf32>
    %cst_88 = arith.constant 1.000000e+00 : f32
    %470 = vector.broadcast %cst_88 : f32 to vector<4x256xf32>
    %471 = arith.subf %469, %470 : vector<4x256xf32>
    %472 = arith.select %468, %466, %471 : vector<4x256xi1>, vector<4x256xf32>
    %473 = arith.addf %31, %472 : vector<4x256xf32>
    %c0_89 = arith.constant 0 : index
    %c0_90 = arith.constant 0 : index
    %c0_91 = arith.constant 0 : index
    %474 = vector.load %arg3[%c0_89, %c0_90, %c0_91] : memref<1x4x256xf32, #tpu.memory_space<vmem>>, vector<1x4x256xf32>
    %475 = vector.shape_cast %474 : vector<1x4x256xf32> to vector<4x256xf32>
    %476 = vector.shape_cast %473 : vector<4x256xf32> to vector<1x4x256xf32>
    tpu.vector_store %arg3[%c0_89, %c0_90, %c0_91], %476 {strides = array<i32>} : memref<1x4x256xf32, #tpu.memory_space<vmem>>, vector<1x4x256xf32>,
    return
  }
  func.func @transform_0(%arg0: i32) -> (i32, i32, i32) {
    %c0_i32 = arith.constant 0 : i32
    %c0_i32_0 = arith.constant 0 : i32
    %c0_i32_1 = arith.constant 0 : i32
    return %arg0, %c0_i32, %c0_i32_0 : i32, i32, i32
  }
  func.func @transform_1(%arg0: i32) -> (i32, i32) {
    %c0_i32 = arith.constant 0 : i32
    %c0_i32_0 = arith.constant 0 : i32
    %c0_i32_1 = arith.constant 0 : i32
    return %c0_i32, %c0_i32_0 : i32, i32
  }
  func.func @transform_2(%arg0: i32) -> (i32, i32, i32) {
    %c0_i32 = arith.constant 0 : i32
    %c0_i32_0 = arith.constant 0 : i32
    %c0_i32_1 = arith.constant 0 : i32
    return %arg0, %c0_i32, %c0_i32_0 : i32, i32, i32
  }
}

</mosaic_0001>

<llo_original>
// kernel: gate_block_forward.1
$region0: #{gate_block_forward.1}
  #allocation0 [shape = 'u32[]', space=smem, size = 0x4, offset = 0x4, fixed_abs, tag = 'smem constant byte address 0x4 - core index']
  #allocation1 [shape = 'u32[144,128]{1,0:T(1,128)}', space=vmem, size = 0x12000, scoped, tag = 'internal scratch']
  %s0 = inlined_call_operand.vmem [shape: f32[2,4,256], index: 0, kind: input, shape index: {}]
  %s1 = inlined_call_operand.vmem [shape: f32[4,47], index: 1, kind: input, shape index: {}]
  %s2 = inlined_call_operand.vmem [shape: f32[2,4,256], index: 2, kind: output, shape index: {}]
  %s3 = sld [smem:[#allocation0]]
  $region41: #{gate_block_forward.1} parent=0
    _
  %s5 = ssub.s32 1, %s3
  %s6 = scalar_select 0, %s5, %s3
  loop: start=0, step=1, limit=4
  $region2: #{gate_block_forward.1} parent=0 // loop_pre_header
    _
  $region3: #{gate_block_forward.1} parent=0 // loop_header
    %s8 = sphi 0, %s12
    %p9 = scmp.ge.s32.totalorder %s8, 4
    %s18 = sphi 0, %s20
    %s21 = sphi 0, %s18
    %s22 = sphi 0, %s21
    %s38 = sphi 0, %s22
    %s42 = sphi 0, %s42
    %s44 = sphi 0, %s42
    %s45 = sphi 0, %s44
    %s59 = sphi 0, %s45
    %s65 = sphi 0, %s67
    %s68 = sphi 0, %s65
    %s69 = sphi 0, %s68
    %s85 = sphi 0, %s69
  $region4: #{gate_block_forward.1} parent=0 // loop_header_branch
    %11 = sbr.rel (%p9) target = $region8
  $region5: #{gate_block_forward.1} parent=0 // loop_body
    %s13 = ssub.s32 %s8, 1
    %s14 = ssub.s32 %s8, 2
    %s15 = sadd.s32 %s8, 1
    %s16 = ssub.s32 %s8, %s15
    %p17 = scmp.eq.s32.totalorder %s16, 0
    %s19 = sadd.s32 %s18, 1
    %s20 = scalar_select %p17, %s18, %s19
    %p23 = pneg %p17
    %p24 = scmp.eq.s32.totalorder %s8, 1
    %p25 = por %p23, %p24
    %p26 = scmp.ne.s32.totalorder %s18, %s21
    %p27 = scmp.eq.s32.totalorder %s8, 0
    %p28 = por %p26, %p27
    %p29 = scmp.ne.s32.totalorder %s18, %s21
    %p30 = scmp.eq.s32.totalorder %s13, 1
    %p31 = por %p29, %p30
    %p32 = scmp.ne.s32.totalorder %s21, %s22
    %p33 = scmp.eq.s32.totalorder %s13, 0
    %p34 = por %p32, %p33
    %p35 = scmp.ne.s32.totalorder %s21, %s22
    %p36 = scmp.eq.s32.totalorder %s14, 1
    %p37 = por %p35, %p36
    %p39 = scmp.ne.s32.totalorder %s22, %s38
    %p40 = scmp.eq.s32.totalorder %s14, 0
    %p41 = por %p39, %p40
    %s43 = sadd.s32 %s42, 1
    %p46 = scmp.eq.s32.totalorder %s8, 1
    %p47 = scmp.ne.s32.totalorder %s42, %s44
    %p48 = scmp.eq.s32.totalorder %s8, 0
    %p49 = por %p47, %p48
    %p50 = scmp.ne.s32.totalorder %s42, %s44
    %p51 = scmp.eq.s32.totalorder %s13, 1
    %p52 = por %p50, %p51
    %p53 = scmp.ne.s32.totalorder %s44, %s45
    %p54 = scmp.eq.s32.totalorder %s13, 0
    %p55 = por %p53, %p54
    %p56 = scmp.ne.s32.totalorder %s44, %s45
    %p57 = scmp.eq.s32.totalorder %s14, 1
    %p58 = por %p56, %p57
    %p60 = scmp.ne.s32.totalorder %s45, %s59
    %p61 = scmp.eq.s32.totalorder %s14, 0
    %p62 = por %p60, %p61
    %s63 = ssub.s32 %s8, %s15
    %p64 = scmp.eq.s32.totalorder %s63, 0
    %s66 = sadd.s32 %s65, 1
    %s67 = scalar_select %p64, %s65, %s66
    %p70 = pneg %p64
    %p71 = scmp.eq.s32.totalorder %s8, 1
    %p72 = por %p70, %p71
    %p73 = scmp.ne.s32.totalorder %s65, %s68
    %p74 = scmp.eq.s32.totalorder %s8, 0
    %p75 = por %p73, %p74
    %p76 = scmp.ne.s32.totalorder %s65, %s68
    %p77 = scmp.eq.s32.totalorder %s13, 1
    %p78 = por %p76, %p77
    %p79 = scmp.ne.s32.totalorder %s68, %s69
    %p80 = scmp.eq.s32.totalorder %s13, 0
    %p81 = por %p79, %p80
    %p82 = scmp.ne.s32.totalorder %s68, %s69
    %p83 = scmp.eq.s32.totalorder %s14, 1
    %p84 = por %p82, %p83
    %p86 = scmp.ne.s32.totalorder %s69, %s85
    %p87 = scmp.eq.s32.totalorder %s14, 0
    %p88 = por %p86, %p87
    %p89 = scmp.le.s32.totalorder 1, %s8
    %p90 = scmp.lt.s32.totalorder %s8, 3
    %p91 = pnand %p89, %p90
    %p92 = pneg %p91
    // Predicated region
    $region9: #{gate_block_forward.1} parent=5 // pred_check
      _
    $region10: #{gate_block_forward.1} parent=5 // pred_check_branch
      %94 = sbr.rel (%p91) target = $region12
    $region11: #{gate_block_forward.1} parent=5 // pred_region
      %s95 = ssub.s32 %s8, 1
      // Predicated region
      $region13: #{gate_block_forward.1} parent=11 // pred_check
        %p96 = pneg %p55
      $region14: #{gate_block_forward.1} parent=11 // pred_check_branch
        %98 = sbr.rel (%p96) target = $region16
      $region15: #{gate_block_forward.1} parent=11 // pred_region
        _
      $region16: #{gate_block_forward.1} parent=11 // pred_fallthru
        _
    $region12: #{gate_block_forward.1} parent=5 // pred_fallthru
      _
    %p99 = scmp.lt.s32.totalorder %s8, 2
    // Predicated region
    $region17: #{gate_block_forward.1} parent=5 // pred_check
      %p100 = pneg %p99
    $region18: #{gate_block_forward.1} parent=5 // pred_check_branch
      %102 = sbr.rel (%p100) target = $region20
    $region19: #{gate_block_forward.1} parent=5 // pred_region
      // Predicated region
      $region21: #{gate_block_forward.1} parent=19 // pred_check
        %p103 = pneg %p28
      $region22: #{gate_block_forward.1} parent=19 // pred_check_branch
        %105 = sbr.rel (%p103) target = $region24
      $region23: #{gate_block_forward.1} parent=19 // pred_region
        %p106 = scmp.lt.s32.totalorder %s8, 1
        %s107 = scalar_select %p106, %s8, 1
        %s108 = smul.addr %s107, 2
        %s109 = smul.addr %s108, 4
        %s110 = scalar_lea.vmem %s0, %s109
      $region24: #{gate_block_forward.1} parent=19 // pred_fallthru
        _
    $region20: #{gate_block_forward.1} parent=5 // pred_fallthru
      _
    %p111 = scmp.le.s32.totalorder 1, %s8
    %p112 = scmp.lt.s32.totalorder %s8, 3
    %p113 = pnand %p111, %p112
    %p114 = pneg %p113
    // Predicated region
    $region25: #{gate_block_forward.1} parent=5 // pred_check
      _
    $region26: #{gate_block_forward.1} parent=5 // pred_check_branch
      %116 = sbr.rel (%p113) target = $region28
    $region27: #{gate_block_forward.1} parent=5 // pred_region
      %s117 = ssub.s32 %s8, 1
      %p118 = scmp.lt.s32.totalorder %s13, 1
      %s119 = scalar_select %p118, %s13, 1
      %s120 = smul.addr %s119, 2
      %s121 = smul.addr %s120, 4
      %s122 = scalar_lea.vmem %s0, %s121
      %p123 = pneg %p34
      %p124 = pneg %p31
      %p125 = pneg %p55
      %p126 = pneg %p52
      %p127 = pneg %p81
      %p128 = pneg %p78
      %p129 = scmp.lt.s32.totalorder %s13, 1
      %s130 = scalar_select %p129, %s13, 1
      %s131 = smul.addr %s130, 2
      %s132 = smul.addr %s131, 4
      %s133 = scalar_lea.vmem %s2, %s132
      %p134 = scmp.lt.s32.totalorder %s13, 1
      %s135 = scalar_select %p134, %s13, 1
      %s136 = smul.addr %s135, 2
      %s137 = smul.addr %s136, 4
      %s138 = scalar_lea.vmem %s0, %s137
      %p139 = scmp.lt.s32.totalorder %s13, 1
      %s140 = scalar_select %p139, %s13, 1
      %s141 = smul.addr %s140, 2
      %s142 = smul.addr %s141, 4
      %s143 = scalar_lea.vmem %s2, %s142
      %v144 = vld [vmem:[%s1] sm:$0xf]
      %v145 = vlaneseq
      %v146 = vand.u32 %v145, 127
      %v147 = vadd.s32 %v146, 128
      %vm148 = vcmp.lt.s32.totalorder %v146, 0
      %v149 = vsub.s32 0, %v146
      %v150 = vsel %vm148, %v149, %v146
      %v151 = vshrl.u32 %v150, 4
      %v152 = vand.u32 %v150, 15
      %v153 = vsub.s32 0, %v152
      %v154 = vsel %vm148, %v153, %v152
      %vm155 = vcmp.lt.s32.totalorder %v147, 0
      %v156 = vsub.s32 0, %v147
      %v157 = vsel %vm155, %v156, %v147
      %v158 = vshrl.u32 %v157, 4
      %v159 = vand.u32 %v157, 15
      %v160 = vsub.s32 0, %v159
      %v161 = vsel %vm155, %v160, %v159
      %vm162 = vcmp.ne.s32.totalorder %v154, 0
      %vm163 = vcmp.ne.s32.totalorder %v161, 0
      %vm164 = vcmp.lt.s32.totalorder %v154, 0
      %vm165 = vcmp.lt.s32.totalorder %v161, 0
      %vm166 = vmand %vm164, %vm162
      %vm167 = vmand %vm165, %vm163
      %v168 = vadd.s32 %v154, 16
      %v169 = vadd.s32 %v161, 16
      %v170 = vsel %vm166, %v168, %v154
      %v171 = vsel %vm167, %v169, %v161
      %vm172 = vcmp.ge.s32.totalorder %v146, 16
      %vm173 = vcmp.ge.s32.totalorder %v147, 16
      %vm174 = vcmp.lt.s32.totalorder %v146, 240
      %vm175 = vcmp.lt.s32.totalorder %v147, 240
      %vm176 = vcmp.ge.s32.totalorder %v170, 1
      %vm177 = vcmp.ge.s32.totalorder %v171, 1
      %vm178 = vcmp.le.s32.totalorder %v170, 14
      %vm179 = vcmp.le.s32.totalorder %v171, 14
      %vm180 = vmand %vm172, %vm176
      %vm181 = vmand %vm173, %vm177
      %vm182 = vmand %vm172, %vm178
      %vm183 = vmand %vm173, %vm179
      %vm184 = vmand %vm174, %vm176
      %vm185 = vmand %vm175, %vm177
      %vm186 = vmand %vm174, %vm178
      %vm187 = vmand %vm175, %vm179
      %v188 = vld [vmem:[%s138] sm:$0xff]
      %190 = vset.pattern.permute.xlu0 0
      %191 = vperm.xlu0 %190, %v144
      %v192 = vpop.permute.xlu0 %191
      %v195 = vlaneseq
      %v196 = vshrl.u32 %v195, 7
      %v197 = vsub.s32 0, %v196
      %v198 = vrot.slane %v188, %v197
      %v199 = vlaneseq
      %v200 = vshrl.u32 %v199, 7
      %v201 = vsub.s32 4, %v200
      %v202 = vrot.slane %v188, %v201
      %v205 = vlaneseq
      %v206 = vshrl.u32 %v205, 7
      %v207 = vsub.s32 0, %v206
      %v208 = vrot.slane %v198, %v207
      %v209 = vlaneseq
      %v210 = vshrl.u32 %v209, 7
      %v211 = vsub.s32 0, %v210
      %v212 = vrot.slane %v202, %v211
      %v213 = vmul.f32 %v192, %v208
      %v214 = vmul.f32 %v192, %v212
      %215 = vset.pattern.permute.xlu0 1
      %216 = vperm.xlu0 %215, %v144
      %v217 = vpop.permute.xlu0 %216
      %v219 = vlaneseq
      %v220 = vshrl.u32 %v219, 7
      %v221 = vsub.s32 1, %v220
      %v222 = vrot.slane %v188, %v221
      %v223 = vlaneseq
      %v224 = vshrl.u32 %v223, 7
      %v225 = vsub.s32 5, %v224
      %v226 = vrot.slane %v188, %v225
      %v229 = vlaneseq
      %v230 = vshrl.u32 %v229, 7
      %v231 = vsub.s32 1, %v230
      %v232 = vrot.slane %v222, %v231
      %v233 = vlaneseq
      %v234 = vshrl.u32 %v233, 7
      %v235 = vsub.s32 1, %v234
      %v236 = vrot.slane %v226, %v235
      %v237 = vmul.f32 %v217, %v232
      %v238 = vmul.f32 %v217, %v236
      %v239 = vadd.f32 %v213, %v237
      %v240 = vadd.f32 %v214, %v238
      %241 = vset.pattern.permute.xlu0 2
      %242 = vperm.xlu0 %241, %v144
      %v243 = vpop.permute.xlu0 %242
      %v245 = vlaneseq
      %v246 = vshrl.u32 %v245, 7
      %v247 = vsub.s32 2, %v246
      %v248 = vrot.slane %v188, %v247
      %v249 = vlaneseq
      %v250 = vshrl.u32 %v249, 7
      %v251 = vsub.s32 6, %v250
      %v252 = vrot.slane %v188, %v251
      %v255 = vlaneseq
      %v256 = vshrl.u32 %v255, 7
      %v257 = vsub.s32 2, %v256
      %v258 = vrot.slane %v248, %v257
      %v259 = vlaneseq
      %v260 = vshrl.u32 %v259, 7
      %v261 = vsub.s32 2, %v260
      %v262 = vrot.slane %v252, %v261
      %v263 = vmul.f32 %v243, %v258
      %v264 = vmul.f32 %v243, %v262
      %v265 = vadd.f32 %v239, %v263
      %v266 = vadd.f32 %v240, %v264
      %267 = vset.pattern.permute.xlu0 3
      %268 = vperm.xlu0 %267, %v144
      %v269 = vpop.permute.xlu0 %268
      %v271 = vlaneseq
      %v272 = vshrl.u32 %v271, 7
      %v273 = vsub.s32 3, %v272
      %v274 = vrot.slane %v188, %v273
      %v275 = vlaneseq
      %v276 = vshrl.u32 %v275, 7
      %v277 = vsub.s32 7, %v276
      %v278 = vrot.slane %v188, %v277
      %v281 = vlaneseq
      %v282 = vshrl.u32 %v281, 7
      %v283 = vsub.s32 3, %v282
      %v284 = vrot.slane %v274, %v283
      %v285 = vlaneseq
      %v286 = vshrl.u32 %v285, 7
      %v287 = vsub.s32 3, %v286
      %v288 = vrot.slane %v278, %v287
      %v289 = vmul.f32 %v269, %v284
      %v290 = vmul.f32 %v269, %v288
      %v291 = vadd.f32 %v265, %v289
      %v292 = vadd.f32 %v266, %v290
      %vm293 = vcmask 1041408
      %v294 = vsel %vm293, %v291, 0.0
      %v295 = vsel %vm293, %v292, 0.0
      %v296 = vadd.f32 %v294, %v295
      %297 = vadd.xlane.f32.xlu0 %v296
      %v298 = vpop.xlane.xlu0 %297
      %v299 = vrcp.pop 256.0
      %v300 = vmul.f32 %v298, %v299
      %v301 = vmul.f32 %v291, %v291
      %v302 = vmul.f32 %v292, %v292
      %v303 = vsel %vm293, %v301, 0.0
      %v304 = vsel %vm293, %v302, 0.0
      %v305 = vadd.f32 %v303, %v304
      %306 = vadd.xlane.f32.xlu0 %v305
      %v307 = vpop.xlane.xlu0 %306
      %v308 = vmul.f32 %v307, %v299
      %v309 = vmul.f32 %v300, %v300
      %v310 = vsub.f32 %v308, %v309
      %v311 = vadd.f32 %v310, 1e-05
      %v312 = vrsqrt.pop %v311
      %v313 = vmul.f32 %v144, %v312
      %315 = vset.pattern.permute.xlu0 35
      %316 = vperm.xlu0 %315, %v313
      %v317 = vpop.permute.xlu0 %316
      %v319 = vmul.f32 %v291, %v317
      %v320 = vmul.f32 %v292, %v317
      %v321 = vmul.f32 %v300, %v313
      %323 = vrot.lane.b32.xlu0 %v321, 1
      %v324 = vpop.permute.xlu0 %323
      %v326 = vsub.f32 %v144, %v324
      %328 = vset.pattern.permute.xlu0 36
      %329 = vperm.xlu0 %328, %v326
      %v330 = vpop.permute.xlu0 %329
      %v332 = vadd.f32 %v319, %v330
      %v333 = vadd.f32 %v320, %v330
      %334 = vrot.lane.b32.xlu0 %v332, 17
      %v335 = vpop.permute.xlu0 %334
      %336 = vrot.lane.b32.xlu0 %v333, 17
      %v337 = vpop.permute.xlu0 %336
      %vm338 = vcmp.lt.s32.totalorder %v146, 17
      %v339 = vsel %vm338, %v335, %v337
      %v340 = vsel %vm338, %v337, %v335
      %v341 = vsel %vm180, 1, 0
      %v342 = vsel %vm181, 1, 0
      %vm343 = vcmp.eq.s32.totalorder %v341, 1
      %vm344 = vcmp.eq.s32.totalorder %v342, 1
      %v345 = vsel %vm343, %v340, 0.0
      %v346 = vsel %vm344, %v339, 0.0
      %347 = vset.pattern.permute.xlu0 8
      %348 = vperm.xlu0 %347, %v144
      %v349 = vpop.permute.xlu0 %348
      %v351 = vmul.f32 %v345, %v349
      %v352 = vmul.f32 %v346, %v349
      %353 = vrot.lane.b32.xlu0 %v332, 16
      %v354 = vpop.permute.xlu0 %353
      %355 = vrot.lane.b32.xlu0 %v333, 16
      %v356 = vpop.permute.xlu0 %355
      %vm357 = vcmp.lt.s32.totalorder %v146, 16
      %v358 = vsel %vm357, %v354, %v356
      %v359 = vsel %vm357, %v356, %v354
      %v360 = vsel %vm172, 1, 0
      %v361 = vsel %vm173, 1, 0
      %vm362 = vcmp.eq.s32.totalorder %v360, 1
      %vm363 = vcmp.eq.s32.totalorder %v361, 1
      %v364 = vsel %vm362, %v359, 0.0
      %v365 = vsel %vm363, %v358, 0.0
      %366 = vset.pattern.permute.xlu0 9
      %367 = vperm.xlu0 %366, %v144
      %v368 = vpop.permute.xlu0 %367
      %v370 = vmul.f32 %v364, %v368
      %v371 = vmul.f32 %v365, %v368
      %v372 = vadd.f32 %v351, %v370
      %v373 = vadd.f32 %v352, %v371
      %374 = vrot.lane.b32.xlu0 %v332, 15
      %v375 = vpop.permute.xlu0 %374
      %376 = vrot.lane.b32.xlu0 %v333, 15
      %v377 = vpop.permute.xlu0 %376
      %vm378 = vcmp.lt.s32.totalorder %v146, 15
      %v379 = vsel %vm378, %v375, %v377
      %v380 = vsel %vm378, %v377, %v375
      %v381 = vsel %vm182, 1, 0
      %v382 = vsel %vm183, 1, 0
      %vm383 = vcmp.eq.s32.totalorder %v381, 1
      %vm384 = vcmp.eq.s32.totalorder %v382, 1
      %v385 = vsel %vm383, %v380, 0.0
      %v386 = vsel %vm384, %v379, 0.0
      %387 = vset.pattern.permute.xlu0 10
      %388 = vperm.xlu0 %387, %v144
      %v389 = vpop.permute.xlu0 %388
      %v391 = vmul.f32 %v385, %v389
      %v392 = vmul.f32 %v386, %v389
      %v393 = vadd.f32 %v372, %v391
      %v394 = vadd.f32 %v373, %v392
      %395 = vrot.lane.b32.xlu0 %v332, 1
      %v396 = vpop.permute.xlu0 %395
      %397 = vrot.lane.b32.xlu0 %v333, 1
      %v398 = vpop.permute.xlu0 %397
      %vm399 = vcmp.lt.s32.totalorder %v146, 1
      %v400 = vsel %vm399, %v396, %v398
      %v401 = vsel %vm399, %v398, %v396
      %v402 = vsel %vm176, 1, 0
      %v403 = vsel %vm177, 1, 0
      %vm404 = vcmp.eq.s32.totalorder %v402, 1
      %vm405 = vcmp.eq.s32.totalorder %v403, 1
      %v406 = vsel %vm404, %v401, 0.0
      %v407 = vsel %vm405, %v400, 0.0
      %408 = vset.pattern.permute.xlu0 11
      %409 = vperm.xlu0 %408, %v144
      %v410 = vpop.permute.xlu0 %409
      %v412 = vmul.f32 %v406, %v410
      %v413 = vmul.f32 %v407, %v410
      %v414 = vadd.f32 %v393, %v412
      %v415 = vadd.f32 %v394, %v413
      %416 = vset.pattern.permute.xlu0 12
      %417 = vperm.xlu0 %416, %v144
      %v418 = vpop.permute.xlu0 %417
      %v420 = vmul.f32 %v332, %v418
      %v421 = vmul.f32 %v333, %v418
      %v422 = vadd.f32 %v414, %v420
      %v423 = vadd.f32 %v415, %v421
      %424 = vrot.lane.b32.xlu0 %v332, 127
      %v425 = vpop.permute.xlu0 %424
      %426 = vrot.lane.b32.xlu0 %v333, 127
      %v427 = vpop.permute.xlu0 %426
      %vm428 = vcmp.lt.s32.totalorder %v146, 127
      %v429 = vsel %vm428, %v425, %v427
      %v430 = vsel %vm428, %v427, %v425
      %v431 = vsel %vm178, 1, 0
      %v432 = vsel %vm179, 1, 0
      %vm433 = vcmp.eq.s32.totalorder %v431, 1
      %vm434 = vcmp.eq.s32.totalorder %v432, 1
      %v435 = vsel %vm433, %v429, 0.0
      %v436 = vsel %vm434, %v430, 0.0
      %437 = vset.pattern.permute.xlu0 13
      %438 = vperm.xlu0 %437, %v144
      %v439 = vpop.permute.xlu0 %438
      %v441 = vmul.f32 %v435, %v439
      %v442 = vmul.f32 %v436, %v439
      %v443 = vadd.f32 %v422, %v441
      %v444 = vadd.f32 %v423, %v442
      %445 = vrot.lane.b32.xlu0 %v332, 113
      %v446 = vpop.permute.xlu0 %445
      %447 = vrot.lane.b32.xlu0 %v333, 113
      %v448 = vpop.permute.xlu0 %447
      %vm449 = vcmp.lt.s32.totalorder %v146, 113
      %v450 = vsel %vm449, %v446, %v448
      %v451 = vsel %vm449, %v448, %v446
      %v452 = vsel %vm184, 1, 0
      %v453 = vsel %vm185, 1, 0
      %vm454 = vcmp.eq.s32.totalorder %v452, 1
      %vm455 = vcmp.eq.s32.totalorder %v453, 1
      %v456 = vsel %vm454, %v450, 0.0
      %v457 = vsel %vm455, %v451, 0.0
      %458 = vset.pattern.permute.xlu0 14
      %459 = vperm.xlu0 %458, %v144
      %v460 = vpop.permute.xlu0 %459
      %v462 = vmul.f32 %v456, %v460
      %v463 = vmul.f32 %v457, %v460
      %v464 = vadd.f32 %v443, %v462
      %v465 = vadd.f32 %v444, %v463
      %466 = vrot.lane.b32.xlu0 %v332, 112
      %v467 = vpop.permute.xlu0 %466
      %468 = vrot.lane.b32.xlu0 %v333, 112
      %v469 = vpop.permute.xlu0 %468
      %vm470 = vcmp.lt.s32.totalorder %v146, 112
      %v471 = vsel %vm470, %v467, %v469
      %v472 = vsel %vm470, %v469, %v467
      %v473 = vsel %vm174, 1, 0
      %v474 = vsel %vm175, 1, 0
      %vm475 = vcmp.eq.s32.totalorder %v473, 1
      %vm476 = vcmp.eq.s32.totalorder %v474, 1
      %v477 = vsel %vm475, %v471, 0.0
      %v478 = vsel %vm476, %v472, 0.0
      %479 = vset.pattern.permute.xlu0 15
      %480 = vperm.xlu0 %479, %v144
      %v481 = vpop.permute.xlu0 %480
      %v483 = vmul.f32 %v477, %v481
      %v484 = vmul.f32 %v478, %v481
      %v485 = vadd.f32 %v464, %v483
      %v486 = vadd.f32 %v465, %v484
      %487 = vrot.lane.b32.xlu0 %v332, 111
      %v488 = vpop.permute.xlu0 %487
      %489 = vrot.lane.b32.xlu0 %v333, 111
      %v490 = vpop.permute.xlu0 %489
      %vm491 = vcmp.lt.s32.totalorder %v146, 111
      %v492 = vsel %vm491, %v488, %v490
      %v493 = vsel %vm491, %v490, %v488
      %v494 = vsel %vm186, 1, 0
      %v495 = vsel %vm187, 1, 0
      %vm496 = vcmp.eq.s32.totalorder %v494, 1
      %vm497 = vcmp.eq.s32.totalorder %v495, 1
      %v498 = vsel %vm496, %v492, 0.0
      %v499 = vsel %vm497, %v493, 0.0
      %500 = vset.pattern.permute.xlu0 16
      %501 = vperm.xlu0 %500, %v144
      %v502 = vpop.permute.xlu0 %501
      %v504 = vmul.f32 %v498, %v502
      %v505 = vmul.f32 %v499, %v502
      %v506 = vadd.f32 %v485, %v504
      %v507 = vadd.f32 %v486, %v505
      %v508 = vsel %vm293, %v506, 0.0
      %v509 = vsel %vm293, %v507, 0.0
      %v510 = vadd.f32 %v508, %v509
      %511 = vadd.xlane.f32.xlu0 %v510
      %v512 = vpop.xlane.xlu0 %511
      %v513 = vmul.f32 %v512, %v299
      %v514 = vmul.f32 %v506, %v506
      %v515 = vmul.f32 %v507, %v507
      %v516 = vsel %vm293, %v514, 0.0
      %v517 = vsel %vm293, %v515, 0.0
      %v518 = vadd.f32 %v516, %v517
      %519 = vadd.xlane.f32.xlu0 %v518
      %v520 = vpop.xlane.xlu0 %519
      %v521 = vmul.f32 %v520, %v299
      %v522 = vmul.f32 %v513, %v513
      %v523 = vsub.f32 %v521, %v522
      %v524 = vadd.f32 %v523, 1e-05
      %v525 = vrsqrt.pop %v524
      %v526 = vmul.f32 %v144, %v525
      %528 = vset.pattern.permute.xlu0 37
      %529 = vperm.xlu0 %528, %v526
      %v530 = vpop.permute.xlu0 %529
      %v532 = vmul.f32 %v506, %v530
      %v533 = vmul.f32 %v507, %v530
      %v534 = vmul.f32 %v513, %v526
      %536 = vrot.lane.b32.xlu0 %v534, 1
      %v537 = vpop.permute.xlu0 %536
      %v539 = vsub.f32 %v144, %v537
      %541 = vset.pattern.permute.xlu0 38
      %542 = vperm.xlu0 %541, %v539
      %v543 = vpop.permute.xlu0 %542
      %v545 = vadd.f32 %v532, %v543
      %v546 = vadd.f32 %v533, %v543
      %vm547 = vcmp.gt.f32.partialorder %v545, 0.0
      %vm548 = vcmp.gt.f32.partialorder %v546, 0.0
      %v549 = vmul.f32 %v545, 1.442695
      %v550 = vpow.pop %v549
      %v551 = vmul.f32 %v546, 1.442695
      %v552 = vpow.pop %v551
      %v553 = vsub.f32 %v550, 1.0
      %v554 = vsub.f32 %v552, 1.0
      %v555 = vsel %vm547, %v545, %v553
      %v556 = vsel %vm548, %v546, %v554
      %557 = vset.pattern.permute.xlu0 4
      %558 = vperm.xlu0 %557, %v144
      %v559 = vpop.permute.xlu0 %558
      %v561 = vlaneseq
      %v562 = vshrl.u32 %v561, 7
      %v563 = vsub.s32 0, %v562
      %v564 = vrot.slane %v555, %v563
      %v565 = vlaneseq
      %v566 = vshrl.u32 %v565, 7
      %v567 = vsub.s32 0, %v566
      %v568 = vrot.slane %v556, %v567
      %v569 = vmul.f32 %v559, %v564
      %v570 = vmul.f32 %v559, %v568
      %571 = vset.pattern.permute.xlu0 5
      %572 = vperm.xlu0 %571, %v144
      %v573 = vpop.permute.xlu0 %572
      %v575 = vlaneseq
      %v576 = vshrl.u32 %v575, 7
      %v577 = vsub.s32 1, %v576
      %v578 = vrot.slane %v555, %v577
      %v579 = vlaneseq
      %v580 = vshrl.u32 %v579, 7
      %v581 = vsub.s32 1, %v580
      %v582 = vrot.slane %v556, %v581
      %v583 = vmul.f32 %v573, %v578
      %v584 = vmul.f32 %v573, %v582
      %v585 = vadd.f32 %v569, %v583
      %v586 = vadd.f32 %v570, %v584
      %vm587 = vcmask 1043456
      %v588 = vsel %vm587, %v585, 0.0
      %v589 = vsel %vm587, %v586, 0.0
      %v590 = vadd.f32 %v588, %v589
      %591 = vadd.xlane.f32.xlu0 %v590
      %v592 = vpop.xlane.xlu0 %591
      %v593 = vmul.f32 %v592, %v299
      %v594 = vmul.f32 %v585, %v585
      %v595 = vmul.f32 %v586, %v586
      %v596 = vsel %vm587, %v594, 0.0
      %v597 = vsel %vm587, %v595, 0.0
      %v598 = vadd.f32 %v596, %v597
      %599 = vadd.xlane.f32.xlu0 %v598
      %v600 = vpop.xlane.xlu0 %599
      %v601 = vmul.f32 %v600, %v299
      %v602 = vmul.f32 %v593, %v593
      %v603 = vsub.f32 %v601, %v602
      %v604 = vadd.f32 %v603, 1e-05
      %v605 = vrsqrt.pop %v604
      %v606 = vmul.f32 %v144, %v605
      %608 = vset.pattern.permute.xlu0 39
      %609 = vperm.xlu0 %608, %v606
      %v610 = vpop.permute.xlu0 %609
      %v612 = vmul.f32 %v585, %v610
      %v613 = vmul.f32 %v586, %v610
      %v614 = vmul.f32 %v593, %v606
      %616 = vrot.lane.b32.xlu0 %v614, 1
      %v617 = vpop.permute.xlu0 %616
      %v619 = vsub.f32 %v144, %v617
      %621 = vset.pattern.permute.xlu0 40
      %622 = vperm.xlu0 %621, %v619
      %v623 = vpop.permute.xlu0 %622
      %v625 = vadd.f32 %v612, %v623
      %v626 = vadd.f32 %v613, %v623
      %627 = vrot.lane.b32.xlu0 %v625, 17
      %v628 = vpop.permute.xlu0 %627
      %629 = vrot.lane.b32.xlu0 %v626, 17
      %v630 = vpop.permute.xlu0 %629
      %v631 = vsel %vm338, %v628, %v630
      %v632 = vsel %vm338, %v630, %v628
      %v633 = vsel %vm343, %v632, 0.0
      %v634 = vsel %vm344, %v631, 0.0
      %635 = vset.pattern.permute.xlu0 17
      %636 = vperm.xlu0 %635, %v144
      %v637 = vpop.permute.xlu0 %636
      %v639 = vmul.f32 %v633, %v637
      %v640 = vmul.f32 %v634, %v637
      %641 = vrot.lane.b32.xlu0 %v625, 16
      %v642 = vpop.permute.xlu0 %641
      %643 = vrot.lane.b32.xlu0 %v626, 16
      %v644 = vpop.permute.xlu0 %643
      %v645 = vsel %vm357, %v642, %v644
      %v646 = vsel %vm357, %v644, %v642
      %v647 = vsel %vm362, %v646, 0.0
      %v648 = vsel %vm363, %v645, 0.0
      %649 = vset.pattern.permute.xlu0 18
      %650 = vperm.xlu0 %649, %v144
      %v651 = vpop.permute.xlu0 %650
      %v653 = vmul.f32 %v647, %v651
      %v654 = vmul.f32 %v648, %v651
      %v655 = vadd.f32 %v639, %v653
      %v656 = vadd.f32 %v640, %v654
      %657 = vrot.lane.b32.xlu0 %v625, 15
      %v658 = vpop.permute.xlu0 %657
      %659 = vrot.lane.b32.xlu0 %v626, 15
      %v660 = vpop.permute.xlu0 %659
      %v661 = vsel %vm378, %v658, %v660
      %v662 = vsel %vm378, %v660, %v658
      %v663 = vsel %vm383, %v662, 0.0
      %v664 = vsel %vm384, %v661, 0.0
      %665 = vset.pattern.permute.xlu0 19
      %666 = vperm.xlu0 %665, %v144
      %v667 = vpop.permute.xlu0 %666
      %v669 = vmul.f32 %v663, %v667
      %v670 = vmul.f32 %v664, %v667
      %v671 = vadd.f32 %v655, %v669
      %v672 = vadd.f32 %v656, %v670
      %673 = vrot.lane.b32.xlu0 %v625, 1
      %v674 = vpop.permute.xlu0 %673
      %675 = vrot.lane.b32.xlu0 %v626, 1
      %v676 = vpop.permute.xlu0 %675
      %v677 = vsel %vm399, %v674, %v676
      %v678 = vsel %vm399, %v676, %v674
      %v679 = vsel %vm404, %v678, 0.0
      %v680 = vsel %vm405, %v677, 0.0
      %681 = vset.pattern.permute.xlu0 20
      %682 = vperm.xlu0 %681, %v144
      %v683 = vpop.permute.xlu0 %682
      %v685 = vmul.f32 %v679, %v683
      %v686 = vmul.f32 %v680, %v683
      %v687 = vadd.f32 %v671, %v685
      %v688 = vadd.f32 %v672, %v686
      %689 = vset.pattern.permute.xlu0 21
      %690 = vperm.xlu0 %689, %v144
      %v691 = vpop.permute.xlu0 %690
      %v693 = vmul.f32 %v625, %v691
      %v694 = vmul.f32 %v626, %v691
      %v695 = vadd.f32 %v687, %v693
      %v696 = vadd.f32 %v688, %v694
      %697 = vrot.lane.b32.xlu0 %v625, 127
      %v698 = vpop.permute.xlu0 %697
      %699 = vrot.lane.b32.xlu0 %v626, 127
      %v700 = vpop.permute.xlu0 %699
      %v701 = vsel %vm428, %v698, %v700
      %v702 = vsel %vm428, %v700, %v698
      %v703 = vsel %vm433, %v701, 0.0
      %v704 = vsel %vm434, %v702, 0.0
      %705 = vset.pattern.permute.xlu0 22
      %706 = vperm.xlu0 %705, %v144
      %v707 = vpop.permute.xlu0 %706
      %v709 = vmul.f32 %v703, %v707
      %v710 = vmul.f32 %v704, %v707
      %v711 = vadd.f32 %v695, %v709
      %v712 = vadd.f32 %v696, %v710
      %713 = vrot.lane.b32.xlu0 %v625, 113
      %v714 = vpop.permute.xlu0 %713
      %715 = vrot.lane.b32.xlu0 %v626, 113
      %v716 = vpop.permute.xlu0 %715
      %v717 = vsel %vm449, %v714, %v716
      %v718 = vsel %vm449, %v716, %v714
      %v719 = vsel %vm454, %v717, 0.0
      %v720 = vsel %vm455, %v718, 0.0
      %721 = vset.pattern.permute.xlu0 23
      %722 = vperm.xlu0 %721, %v144
      %v723 = vpop.permute.xlu0 %722
      %v725 = vmul.f32 %v719, %v723
      %v726 = vmul.f32 %v720, %v723
      %v727 = vadd.f32 %v711, %v725
      %v728 = vadd.f32 %v712, %v726
      %729 = vrot.lane.b32.xlu0 %v625, 112
      %v730 = vpop.permute.xlu0 %729
      %731 = vrot.lane.b32.xlu0 %v626, 112
      %v732 = vpop.permute.xlu0 %731
      %v733 = vsel %vm470, %v730, %v732
      %v734 = vsel %vm470, %v732, %v730
      %v735 = vsel %vm475, %v733, 0.0
      %v736 = vsel %vm476, %v734, 0.0
      %737 = vset.pattern.permute.xlu0 24
      %738 = vperm.xlu0 %737, %v144
      %v739 = vpop.permute.xlu0 %738
      %v741 = vmul.f32 %v735, %v739
      %v742 = vmul.f32 %v736, %v739
      %v743 = vadd.f32 %v727, %v741
      %v744 = vadd.f32 %v728, %v742
      %745 = vrot.lane.b32.xlu0 %v625, 111
      %v746 = vpop.permute.xlu0 %745
      %747 = vrot.lane.b32.xlu0 %v626, 111
      %v748 = vpop.permute.xlu0 %747
      %v749 = vsel %vm491, %v746, %v748
      %v750 = vsel %vm491, %v748, %v746
      %v751 = vsel %vm496, %v749, 0.0
      %v752 = vsel %vm497, %v750, 0.0
      %753 = vset.pattern.permute.xlu0 25
      %754 = vperm.xlu0 %753, %v144
      %v755 = vpop.permute.xlu0 %754
      %v757 = vmul.f32 %v751, %v755
      %v758 = vmul.f32 %v752, %v755
      %v759 = vadd.f32 %v743, %v757
      %v760 = vadd.f32 %v744, %v758
      %v761 = vsel %vm587, %v759, 0.0
      %v762 = vsel %vm587, %v760, 0.0
      %v763 = vadd.f32 %v761, %v762
      %764 = vadd.xlane.f32.xlu0 %v763
      %v765 = vpop.xlane.xlu0 %764
      %v766 = vmul.f32 %v765, %v299
      %v767 = vmul.f32 %v759, %v759
      %v768 = vmul.f32 %v760, %v760
      %v769 = vsel %vm587, %v767, 0.0
      %v770 = vsel %vm587, %v768, 0.0
      %v771 = vadd.f32 %v769, %v770
      %772 = vadd.xlane.f32.xlu0 %v771
      %v773 = vpop.xlane.xlu0 %772
      %v774 = vmul.f32 %v773, %v299
      %v775 = vmul.f32 %v766, %v766
      %v776 = vsub.f32 %v774, %v775
      %v777 = vadd.f32 %v776, 1e-05
      %v778 = vrsqrt.pop %v777
      %v779 = vmul.f32 %v144, %v778
      %781 = vset.pattern.permute.xlu0 41
      %782 = vperm.xlu0 %781, %v779
      %v783 = vpop.permute.xlu0 %782
      %v785 = vmul.f32 %v759, %v783
      %v786 = vmul.f32 %v760, %v783
      %v787 = vmul.f32 %v766, %v779
      %789 = vrot.lane.b32.xlu0 %v787, 1
      %v790 = vpop.permute.xlu0 %789
      %v792 = vsub.f32 %v144, %v790
      %794 = vset.pattern.permute.xlu0 42
      %795 = vperm.xlu0 %794, %v792
      %v796 = vpop.permute.xlu0 %795
      %v798 = vadd.f32 %v785, %v796
      %v799 = vadd.f32 %v786, %v796
      %v800 = vand.u32 2147483647, %v798
      %v801 = vand.u32 2147483647, %v799
      %v802 = vsub.f32 0.0, %v800
      %v803 = vsub.f32 0.0, %v801
      %v804 = vmul.f32 %v802, 1.442695
      %v805 = vpow.pop %v804
      %v806 = vmul.f32 %v803, 1.442695
      %v807 = vpow.pop %v806
      %vm808 = vcmp.ge.f32.partialorder %v798, 0.0
      %vm809 = vcmp.ge.f32.partialorder %v799, 0.0
      %v810 = vsel %vm808, 1.0, %v805
      %v811 = vsel %vm809, 1.0, %v807
      %v812 = vadd.f32 %v805, 1.0
      %v813 = vadd.f32 %v807, 1.0
      %v814 = vrcp.pop %v812
      %v815 = vmul.f32 %v810, %v814
      %v816 = vrcp.pop %v813
      %v817 = vmul.f32 %v811, %v816
      %v818 = vtanh.pop %v798
      %v819 = vtanh.pop %v799
      %v822 = vrot.slane %v818, 6
      %v823 = vrot.slane %v819, 6
      %v826 = vmul.f32 %v815, %v822
      %v827 = vmul.f32 %v817, %v823
      %828 = vset.pattern.permute.xlu0 6
      %829 = vperm.xlu0 %828, %v144
      %v830 = vpop.permute.xlu0 %829
      %v832 = vlaneseq
      %v833 = vshrl.u32 %v832, 7
      %v834 = vsub.s32 2, %v833
      %v835 = vrot.slane %v826, %v834
      %v836 = vlaneseq
      %v837 = vshrl.u32 %v836, 7
      %v838 = vsub.s32 2, %v837
      %v839 = vrot.slane %v827, %v838
      %v840 = vmul.f32 %v830, %v835
      %v841 = vmul.f32 %v830, %v839
      %842 = vset.pattern.permute.xlu0 7
      %843 = vperm.xlu0 %842, %v144
      %v844 = vpop.permute.xlu0 %843
      %v846 = vlaneseq
      %v847 = vshrl.u32 %v846, 7
      %v848 = vsub.s32 3, %v847
      %v849 = vrot.slane %v826, %v848
      %v850 = vlaneseq
      %v851 = vshrl.u32 %v850, 7
      %v852 = vsub.s32 3, %v851
      %v853 = vrot.slane %v827, %v852
      %v854 = vmul.f32 %v844, %v849
      %v855 = vmul.f32 %v844, %v853
      %v856 = vadd.f32 %v840, %v854
      %v857 = vadd.f32 %v841, %v855
      %v858 = vsel %vm587, %v856, 0.0
      %v859 = vsel %vm587, %v857, 0.0
      %v860 = vadd.f32 %v858, %v859
      %861 = vadd.xlane.f32.xlu0 %v860
      %v862 = vpop.xlane.xlu0 %861
      %v863 = vmul.f32 %v862, %v299
      %v864 = vmul.f32 %v856, %v856
      %v865 = vmul.f32 %v857, %v857
      %v866 = vsel %vm587, %v864, 0.0
      %v867 = vsel %vm587, %v865, 0.0
      %v868 = vadd.f32 %v866, %v867
      %869 = vadd.xlane.f32.xlu0 %v868
      %v870 = vpop.xlane.xlu0 %869
      %v871 = vmul.f32 %v870, %v299
      %v872 = vmul.f32 %v863, %v863
      %v873 = vsub.f32 %v871, %v872
      %v874 = vadd.f32 %v873, 1e-05
      %v875 = vrsqrt.pop %v874
      %v876 = vmul.f32 %v144, %v875
      %878 = vset.pattern.permute.xlu0 43
      %879 = vperm.xlu0 %878, %v876
      %v880 = vpop.permute.xlu0 %879
      %v882 = vmul.f32 %v856, %v880
      %v883 = vmul.f32 %v857, %v880
      %v884 = vmul.f32 %v863, %v876
      %886 = vrot.lane.b32.xlu0 %v884, 1
      %v887 = vpop.permute.xlu0 %886
      %v889 = vsub.f32 %v144, %v887
      %891 = vset.pattern.permute.xlu0 44
      %892 = vperm.xlu0 %891, %v889
      %v893 = vpop.permute.xlu0 %892
      %v895 = vadd.f32 %v882, %v893
      %v896 = vadd.f32 %v883, %v893
      %897 = vrot.lane.b32.xlu0 %v895, 17
      %v898 = vpop.permute.xlu0 %897
      %899 = vrot.lane.b32.xlu0 %v896, 17
      %v900 = vpop.permute.xlu0 %899
      %v901 = vsel %vm338, %v898, %v900
      %v902 = vsel %vm338, %v900, %v898
      %v903 = vsel %vm343, %v902, 0.0
      %v904 = vsel %vm344, %v901, 0.0
      %905 = vset.pattern.permute.xlu0 26
      %906 = vperm.xlu0 %905, %v144
      %v907 = vpop.permute.xlu0 %906
      %v909 = vmul.f32 %v903, %v907
      %v910 = vmul.f32 %v904, %v907
      %911 = vrot.lane.b32.xlu0 %v895, 16
      %v912 = vpop.permute.xlu0 %911
      %913 = vrot.lane.b32.xlu0 %v896, 16
      %v914 = vpop.permute.xlu0 %913
      %v915 = vsel %vm357, %v912, %v914
      %v916 = vsel %vm357, %v914, %v912
      %v917 = vsel %vm362, %v916, 0.0
      %v918 = vsel %vm363, %v915, 0.0
      %919 = vset.pattern.permute.xlu0 27
      %920 = vperm.xlu0 %919, %v144
      %v921 = vpop.permute.xlu0 %920
      %v923 = vmul.f32 %v917, %v921
      %v924 = vmul.f32 %v918, %v921
      %v925 = vadd.f32 %v909, %v923
      %v926 = vadd.f32 %v910, %v924
      %927 = vrot.lane.b32.xlu0 %v895, 15
      %v928 = vpop.permute.xlu0 %927
      %929 = vrot.lane.b32.xlu0 %v896, 15
      %v930 = vpop.permute.xlu0 %929
      %v931 = vsel %vm378, %v928, %v930
      %v932 = vsel %vm378, %v930, %v928
      %v933 = vsel %vm383, %v932, 0.0
      %v934 = vsel %vm384, %v931, 0.0
      %935 = vset.pattern.permute.xlu0 28
      %936 = vperm.xlu0 %935, %v144
      %v937 = vpop.permute.xlu0 %936
      %v939 = vmul.f32 %v933, %v937
      %v940 = vmul.f32 %v934, %v937
      %v941 = vadd.f32 %v925, %v939
      %v942 = vadd.f32 %v926, %v940
      %943 = vrot.lane.b32.xlu0 %v895, 1
      %v944 = vpop.permute.xlu0 %943
      %945 = vrot.lane.b32.xlu0 %v896, 1
      %v946 = vpop.permute.xlu0 %945
      %v947 = vsel %vm399, %v944, %v946
      %v948 = vsel %vm399, %v946, %v944
      %v949 = vsel %vm404, %v948, 0.0
      %v950 = vsel %vm405, %v947, 0.0
      %951 = vset.pattern.permute.xlu0 29
      %952 = vperm.xlu0 %951, %v144
      %v953 = vpop.permute.xlu0 %952
      %v955 = vmul.f32 %v949, %v953
      %v956 = vmul.f32 %v950, %v953
      %v957 = vadd.f32 %v941, %v955
      %v958 = vadd.f32 %v942, %v956
      %959 = vset.pattern.permute.xlu0 30
      %960 = vperm.xlu0 %959, %v144
      %v961 = vpop.permute.xlu0 %960
      %v963 = vmul.f32 %v895, %v961
      %v964 = vmul.f32 %v896, %v961
      %v965 = vadd.f32 %v957, %v963
      %v966 = vadd.f32 %v958, %v964
      %967 = vrot.lane.b32.xlu0 %v895, 127
      %v968 = vpop.permute.xlu0 %967
      %969 = vrot.lane.b32.xlu0 %v896, 127
      %v970 = vpop.permute.xlu0 %969
      %v971 = vsel %vm428, %v968, %v970
      %v972 = vsel %vm428, %v970, %v968
      %v973 = vsel %vm433, %v971, 0.0
      %v974 = vsel %vm434, %v972, 0.0
      %975 = vset.pattern.permute.xlu0 31
      %976 = vperm.xlu0 %975, %v144
      %v977 = vpop.permute.xlu0 %976
      %v979 = vmul.f32 %v973, %v977
      %v980 = vmul.f32 %v974, %v977
      %v981 = vadd.f32 %v965, %v979
      %v982 = vadd.f32 %v966, %v980
      %983 = vrot.lane.b32.xlu0 %v895, 113
      %v984 = vpop.permute.xlu0 %983
      %985 = vrot.lane.b32.xlu0 %v896, 113
      %v986 = vpop.permute.xlu0 %985
      %v987 = vsel %vm449, %v984, %v986
      %v988 = vsel %vm449, %v986, %v984
      %v989 = vsel %vm454, %v987, 0.0
      %v990 = vsel %vm455, %v988, 0.0
      %991 = vset.pattern.permute.xlu0 32
      %992 = vperm.xlu0 %991, %v144
      %v993 = vpop.permute.xlu0 %992
      %v995 = vmul.f32 %v989, %v993
      %v996 = vmul.f32 %v990, %v993
      %v997 = vadd.f32 %v981, %v995
      %v998 = vadd.f32 %v982, %v996
      %999 = vrot.lane.b32.xlu0 %v895, 112
      %v1000 = vpop.permute.xlu0 %999
      %1001 = vrot.lane.b32.xlu0 %v896, 112
      %v1002 = vpop.permute.xlu0 %1001
      %v1003 = vsel %vm470, %v1000, %v1002
      %v1004 = vsel %vm470, %v1002, %v1000
      %v1005 = vsel %vm475, %v1003, 0.0
      %v1006 = vsel %vm476, %v1004, 0.0
      %1007 = vset.pattern.permute.xlu0 33
      %1008 = vperm.xlu0 %1007, %v144
      %v1009 = vpop.permute.xlu0 %1008
      %v1011 = vmul.f32 %v1005, %v1009
      %v1012 = vmul.f32 %v1006, %v1009
      %v1013 = vadd.f32 %v997, %v1011
      %v1014 = vadd.f32 %v998, %v1012
      %1015 = vrot.lane.b32.xlu0 %v895, 111
      %v1016 = vpop.permute.xlu0 %1015
      %1017 = vrot.lane.b32.xlu0 %v896, 111
      %v1018 = vpop.permute.xlu0 %1017
      %v1019 = vsel %vm491, %v1016, %v1018
      %v1020 = vsel %vm491, %v1018, %v1016
      %v1021 = vsel %vm496, %v1019, 0.0
      %v1022 = vsel %vm497, %v1020, 0.0
      %1023 = vset.pattern.permute.xlu0 34
      %1024 = vperm.xlu0 %1023, %v144
      %v1025 = vpop.permute.xlu0 %1024
      %v1027 = vmul.f32 %v1021, %v1025
      %v1028 = vmul.f32 %v1022, %v1025
      %v1029 = vadd.f32 %v1013, %v1027
      %v1030 = vadd.f32 %v1014, %v1028
      %v1031 = vsel %vm587, %v1029, 0.0
      %v1032 = vsel %vm587, %v1030, 0.0
      %v1033 = vadd.f32 %v1031, %v1032
      %1034 = vadd.xlane.f32.xlu0 %v1033
      %v1035 = vpop.xlane.xlu0 %1034
      %v1036 = vmul.f32 %v1035, %v299
      %v1037 = vmul.f32 %v1029, %v1029
      %v1038 = vmul.f32 %v1030, %v1030
      %v1039 = vsel %vm587, %v1037, 0.0
      %v1040 = vsel %vm587, %v1038, 0.0
      %v1041 = vadd.f32 %v1039, %v1040
      %1042 = vadd.xlane.f32.xlu0 %v1041
      %v1043 = vpop.xlane.xlu0 %1042
      %v1044 = vmul.f32 %v1043, %v299
      %v1045 = vmul.f32 %v1036, %v1036
      %v1046 = vsub.f32 %v1044, %v1045
      %v1047 = vadd.f32 %v1046, 1e-05
      %v1048 = vrsqrt.pop %v1047
      %v1049 = vmul.f32 %v144, %v1048
      %1051 = vset.pattern.permute.xlu0 45
      %1052 = vperm.xlu0 %1051, %v1049
      %v1053 = vpop.permute.xlu0 %1052
      %v1055 = vmul.f32 %v1029, %v1053
      %v1056 = vmul.f32 %v1030, %v1053
      %v1057 = vmul.f32 %v1036, %v1049
      %1059 = vrot.lane.b32.xlu0 %v1057, 1
      %v1060 = vpop.permute.xlu0 %1059
      %v1062 = vsub.f32 %v144, %v1060
      %1064 = vset.pattern.permute.xlu0 46
      %1065 = vperm.xlu0 %1064, %v1062
      %v1066 = vpop.permute.xlu0 %1065
      %v1068 = vadd.f32 %v1055, %v1066
      %v1069 = vadd.f32 %v1056, %v1066
      %vm1070 = vcmp.gt.f32.partialorder %v1068, 0.0
      %vm1071 = vcmp.gt.f32.partialorder %v1069, 0.0
      %v1072 = vmul.f32 %v1068, 1.442695
      %v1073 = vpow.pop %v1072
      %v1074 = vmul.f32 %v1069, 1.442695
      %v1075 = vpow.pop %v1074
      %v1076 = vsub.f32 %v1073, 1.0
      %v1077 = vsub.f32 %v1075, 1.0
      %v1078 = vsel %vm1070, %v1068, %v1076
      %v1079 = vsel %vm1071, %v1069, %v1077
      %v1082 = vcombine.low %v1078, %v1079
      %v1084 = vadd.f32 %v188, %v1082
      %1085 = vst [vmem:[%s143] sm:$0xff] %v1084
      %p1086 = scmp.lt.s32.totalorder %s13, 1
      %s1087 = scalar_select %p1086, %s13, 1
      %s1088 = smul.addr %s1087, 2
      %s1089 = smul.addr %s1088, 4
      %s1090 = scalar_lea.vmem %s2, %s1089
      // Predicated region
      $region29: #{gate_block_forward.1} parent=27 // pred_check
        %p1091 = pneg %p78
      $region30: #{gate_block_forward.1} parent=27 // pred_check_branch
        %1093 = sbr.rel (%p1091) target = $region32
      $region31: #{gate_block_forward.1} parent=27 // pred_region
        _
      $region32: #{gate_block_forward.1} parent=27 // pred_fallthru
        _
    $region28: #{gate_block_forward.1} parent=5 // pred_fallthru
      _
    %p1094 = scmp.le.s32.totalorder 2, %s8
    // Predicated region
    $region33: #{gate_block_forward.1} parent=5 // pred_check
      %p1095 = pneg %p1094
    $region34: #{gate_block_forward.1} parent=5 // pred_check_branch
      %1097 = sbr.rel (%p1095) target = $region36
    $region35: #{gate_block_forward.1} parent=5 // pred_region
      %s1098 = ssub.s32 %s8, 2
      // Predicated region
      $region37: #{gate_block_forward.1} parent=35 // pred_check
        %p1099 = pneg %p84
      $region38: #{gate_block_forward.1} parent=35 // pred_check_branch
        %1101 = sbr.rel (%p1099) target = $region40
      $region39: #{gate_block_forward.1} parent=35 // pred_region
        %p1102 = scmp.lt.s32.totalorder %s14, 1
        %s1103 = scalar_select %p1102, %s14, 1
        %s1104 = smul.addr %s1103, 2
        %s1105 = smul.addr %s1104, 4
        %s1106 = scalar_lea.vmem %s2, %s1105
      $region40: #{gate_block_forward.1} parent=35 // pred_fallthru
        _
    $region36: #{gate_block_forward.1} parent=5 // pred_fallthru
      _
  $region6: #{gate_block_forward.1} parent=0 // loop_footer
    %s12 = sadd.s32 1, %s8
  $region7: #{gate_block_forward.1} parent=0 // loop_footer_branch
    %7 = sbr.rel target = $region3
  $region8: #{gate_block_forward.1} parent=0 // loop_exit
    _

</llo_original>
